<compile_context>
chip_gen: v5e
topology: v5e:2x2
jax: 0.10.0
libtpu: 0.0.40
codegen_flags: <defaults>
</compile_context>

<pallas_src>
import functools

import jax
import jax.numpy as jnp
from jax import lax
from jax.experimental import pallas as pl
from jax.experimental.pallas import tpu as pltpu


def _round_up(a, b):
    return (a + b - 1) // b * b


# ----------------------------------------------------------------------------
# Pallas kernels
# ----------------------------------------------------------------------------
def _conv_stats_kernel(x0_ref, x1_ref, w_ref, mask_ref, y_ref, s1_ref, s2_ref,
                       xcat_ref, *, cin_p, c_out, k, th, wp_al):
    """One (image b, row-tile i) step of the reflect-padded conv with fused per-image
    BatchNorm partial statistics.

    x0_ref : (1, cin_p, th*wp_al) bf16  rows [i*th, (i+1)*th) of the padded image (flat, pitch wp_al)
    x1_ref : (1, cin_p, th*wp_al) bf16  rows [(i+1)*th, (i+2)*th)  (halo for dh > 0)
    w_ref  : (k*k, c_out, cin_p)  bf16  row dh*k+dw holds W[:, :, dh, dw]
    mask_ref: (1, th*wp_al)       f32   1.0 on valid output columns (col < Wo), else 0.0
    y_ref  : (1, c_out, th*wp_al) bf16  conv output tile in the same wide/flat layout
    s1/s2  : (1, c_out, 128)      f32   per-image running sum / sum-of-squares (resident over i)
    xcat_ref: (cin_p, 2*th*wp_al) bf16  VMEM scratch stitching the two row blocks
    """
    i = pl.program_id(1)
    l = th * wp_al

    @pl.when(i == 0)
    def _init_stats():
        s1_ref[...] = jnp.zeros_like(s1_ref)
        s2_ref[...] = jnp.zeros_like(s2_ref)

    # Stitch current row block + halo block in VMEM (static, aligned lane stores).
    xcat_ref[:, :l] = x0_ref[0]
    xcat_ref[:, l:] = x1_ref[0]

    # In-VMEM patch gather: every (dh, dw) tap is a statically lane-shifted slab of the
    # stitched rows; each tap is a small MXU contraction accumulated in f32.
    acc = jnp.zeros((c_out, l), jnp.float32)
    for dh in range(k):
        for dw in range(k):
            off = dh * wp_al + dw
            slab = xcat_ref[:, off:off + l]            # (cin_p, l), VMEM-local shift
            wk = w_ref[dh * k + dw]                    # (c_out, cin_p)
            acc = acc + jnp.dot(wk, slab, preferred_element_type=jnp.float32)

    # Fused partial BN statistics from the f32 accumulator.  Garbage columns (col >= Wo,
    # an artifact of the 128-aligned row pitch) are masked out; every lane of the (c_out,128)
    # stats block carries the same running value (unmasked, lane-dense stores).
    valid = acc * mask_ref[...]
    s1_ref[...] = s1_ref[...] + jnp.sum(valid, axis=1, keepdims=True)[None]
    s2_ref[...] = s2_ref[...] + jnp.sum(valid * acc, axis=1, keepdims=True)[None]

    # bf16 intermediate y, stored lane-dense in the wide layout.
    y_ref[...] = acc.astype(y_ref.dtype)[None]


def _bn_act_kernel(y_ref, scale_ref, shift_ref, o_ref, *, wo):
    """Fused BatchNorm affine + activation (Identity) that also drops the wide-layout
    padding columns and writes the final NCHW output directly."""
    y = y_ref[...][0, :, :, :wo].astype(jnp.float32)     # (c_out, th, wo)
    o = y * scale_ref[...] + shift_ref[...]              # scale/shift: (c_out, 1, 1)
    o_ref[...] = o.astype(o_ref.dtype)[None]


# ----------------------------------------------------------------------------
# pallas_call wrappers
# ----------------------------------------------------------------------------
def _conv_stats_pallas(x_flat, w_kk, mask, *, c_out, k, ho, th, wp_al, cin_p):
    n = x_flat.shape[0]
    num_h = ho // th
    l = th * wp_al
    kern = functools.partial(_conv_stats_kernel, cin_p=cin_p, c_out=c_out, k=k,
                             th=th, wp_al=wp_al)
    return pl.pallas_call(
        kern,
        out_shape=(jax.ShapeDtypeStruct((n, c_out, ho * wp_al), jnp.bfloat16),
                   jax.ShapeDtypeStruct((n, c_out, 128), jnp.float32),
                   jax.ShapeDtypeStruct((n, c_out, 128), jnp.float32)),
        grid_spec=pltpu.PrefetchScalarGridSpec(
            num_scalar_prefetch=0,
            grid=(n, num_h),
            in_specs=[
                pl.BlockSpec((1, cin_p, l), lambda b, i: (b, 0, i)),       # row block i
                pl.BlockSpec((1, cin_p, l), lambda b, i: (b, 0, i + 1)),   # halo block
                pl.BlockSpec((k * k, c_out, cin_p), lambda b, i: (0, 0, 0)),
                pl.BlockSpec((1, l), lambda b, i: (0, 0)),
            ],
            out_specs=[
                pl.BlockSpec((1, c_out, l), lambda b, i: (b, 0, i)),        # lane-dense y
                pl.BlockSpec((1, c_out, 128), lambda b, i: (b, 0, 0)),      # resident stats
                pl.BlockSpec((1, c_out, 128), lambda b, i: (b, 0, 0)),
            ],
            scratch_shapes=[pltpu.VMEM((cin_p, 2 * l), jnp.bfloat16)],
        ),
        compiler_params=pltpu.CompilerParams(
            dimension_semantics=("parallel", "arbitrary")),
    )(x_flat, x_flat, w_kk, mask)


def _bn_act_pallas(y4, scale, shift, *, wo, th):
    n, c_out, ho, wp_al = y4.shape
    num_h = ho // th
    kern = functools.partial(_bn_act_kernel, wo=wo)
    return pl.pallas_call(
        kern,
        out_shape=jax.ShapeDtypeStruct((n, c_out, ho, wo), jnp.float32),
        grid_spec=pltpu.PrefetchScalarGridSpec(
            num_scalar_prefetch=0,
            grid=(n, num_h),
            in_specs=[
                pl.BlockSpec((1, c_out, th, wp_al), lambda b, i: (b, 0, i, 0)),
                pl.BlockSpec((c_out, 1, 1), lambda b, i: (0, 0, 0)),
                pl.BlockSpec((c_out, 1, 1), lambda b, i: (0, 0, 0)),
            ],
            out_specs=pl.BlockSpec((1, c_out, th, wo), lambda b, i: (b, 0, i, 0)),
        ),
        compiler_params=pltpu.CompilerParams(
            dimension_semantics=("parallel", "parallel")),
    )(y4, scale, shift)


# ----------------------------------------------------------------------------
# Host-side glue
# ----------------------------------------------------------------------------
def _pick_th(ho, wp_al, c_out, cin_p, k):
    """Output-row tile height: divides Ho, multiple of 8 (or == Ho), >= k-1, sized from a
    VMEM budget safe on v7x (64 MiB physical / 32 MiB scoped default), preferring >= 2
    grid steps along h (v7x dual-TC / pipelining overlap)."""
    budget = 16 * 1024 * 1024

    def fits(t):
        l = t * wp_al
        return (4 * cin_p * l * 2            # two x blocks, double-buffered, bf16
                + cin_p * 2 * l * 2          # stitched-rows scratch
                + 2 * c_out * l * 4          # f32 accumulator (+ headroom)
                + 2 * c_out * l * 2          # y block, double-buffered, bf16
                ) <= budget

    cands = [t for t in range(8, ho + 1, 8)
             if ho % t == 0 and t >= k - 1 and fits(t)]
    if not cands:
        return ho                            # single row-tile per image
    multi = [t for t in cands if ho // t >= 2]
    return max(multi) if multi else max(cands)


def _fallback_forward(x, w, gamma, beta, k, stride, padding, eps):
    # TODO(synk): only stride == 1 has a Pallas path; this keeps module semantics otherwise.
    xp = jnp.pad(x, ((0, 0), (0, 0), (padding, padding), (padding, padding)),
                 mode="reflect") if padding > 0 else x
    y = lax.conv_general_dilated(xp.astype(jnp.float32), w.astype(jnp.float32),
                                 (stride, stride), "VALID",
                                 dimension_numbers=("NCHW", "OIHW", "NCHW"))
    mean = jnp.mean(y, axis=(0, 2, 3), keepdims=True)
    var = jnp.mean(jnp.square(y - mean), axis=(0, 2, 3), keepdims=True)
    return ((y - mean) * lax.rsqrt(var + eps) * gamma[None, :, None, None]
            + beta[None, :, None, None])


@functools.partial(jax.jit, static_argnames=("kernel_size", "stride", "padding", "eps"))
def init_ffc_bn_act_forward(x_nchw, conv_weight, bn_gamma, bn_beta,
                            kernel_size, stride=1, padding=0, eps=1e-5):
    """Forward pass of INIT_FFC_BN_ACT (x_l path; the module's x_g == 0 is left to the caller).

    Conv2d(bias=False, padding_mode='reflect') -> BatchNorm2d (training-mode batch statistics,
    biased variance, as a freshly constructed module would use) -> Identity.
    """
    n, c_in, h, w_in = x_nchw.shape
    c_out = conv_weight.shape[0]
    k = kernel_size

    hp, wp = h + 2 * padding, w_in + 2 * padding
    ho, wo = (hp - k) // stride + 1, (wp - k) // stride + 1
    if stride != 1 or ho < max(1, k - 1):
        return _fallback_forward(x_nchw, conv_weight, bn_gamma, bn_beta,
                                 k, stride, padding, eps)

    # ---- glue (all bf16, all input-sized): reflect pad + channel / width / row zero pads ----
    x_bf = x_nchw.astype(jnp.bfloat16)
    if padding > 0:
        x_bf = jnp.pad(x_bf, ((0, 0), (0, 0), (padding, padding), (padding, padding)),
                       mode="reflect")
    cin_p = _round_up(c_in, 8)                 # sublane-friendly contraction
    wp_al = _round_up(wp, 128)                 # 128-aligned row pitch -> lane-aligned blocks

    th = _pick_th(ho, wp_al, c_out, cin_p, k)
    num_h = ho // th
    n_xblk = max(num_h + 1, -(-hp // th))      # extra block so the halo read is always in-bounds
    hp_tot = n_xblk * th

    x_bf = jnp.pad(x_bf, ((0, 0), (0, cin_p - c_in), (0, hp_tot - hp), (0, wp_al - wp)))
    x_flat = x_bf.reshape(n, cin_p, hp_tot * wp_al)          # free metadata reshape

    w_kk = jnp.pad(conv_weight, ((0, 0), (0, cin_p - c_in), (0, 0), (0, 0)))
    w_kk = w_kk.transpose(2, 3, 0, 1).reshape(k * k, c_out, cin_p).astype(jnp.bfloat16)

    col_valid = jnp.arange(wp_al) < wo
    mask = jnp.tile(col_valid, th).astype(jnp.float32)[None, :]   # (1, th*wp_al)

    # ---- conv + fused per-image BN partial statistics (Pallas, MXU hot path) ----
    y_wide, s1, s2 = _conv_stats_pallas(x_flat, w_kk, mask, c_out=c_out, k=k,
                                        ho=ho, th=th, wp_al=wp_al, cin_p=cin_p)

    # ---- finish BatchNorm statistics (tiny N x C_out reduction) ----
    m = n * ho * wo
    tot1 = jnp.sum(s1[:, :, 0], axis=0)
    tot2 = jnp.sum(s2[:, :, 0], axis=0)
    mean = tot1 / m
    var = jnp.maximum(tot2 / m - mean * mean, 0.0)            # biased variance, f32
    scale_v = bn_gamma.astype(jnp.float32) * lax.rsqrt(var + eps)
    shift_v = bn_beta.astype(jnp.float32) - mean * scale_v

    # ---- fused BN affine + activation (Identity) + NCHW restore (Pallas) ----
    y4 = y_wide.reshape(n, c_out, ho, wp_al)                  # free metadata reshape
    out = _bn_act_pallas(y4, scale_v.reshape(c_out, 1, 1), shift_v.reshape(c_out, 1, 1),
                         wo=wo, th=th)
    return out


# ----------------------------------------------------------------------------
# Reference (plain JAX, f32) for correctness check
# ----------------------------------------------------------------------------
def _reference(x_nchw, conv_weight, bn_gamma, bn_beta, kernel_size, stride, padding, eps=1e-5):
    xp = jnp.pad(x_nchw, ((0, 0), (0, 0), (padding, padding), (padding, padding)),
                 mode="reflect") if padding > 0 else x_nchw
    y = lax.conv_general_dilated(
        xp.astype(jnp.float32), conv_weight.astype(jnp.float32),
        window_strides=(stride, stride), padding="VALID",
        dimension_numbers=("NCHW", "OIHW", "NCHW"))
    mean = jnp.mean(y, axis=(0, 2, 3), keepdims=True)
    var = jnp.mean(jnp.square(y - mean), axis=(0, 2, 3), keepdims=True)
    yhat = (y - mean) / jnp.sqrt(var + eps)
    return yhat * bn_gamma[None, :, None, None] + bn_beta[None, :, None, None]


# ----------------------------------------------------------------------------
# Main
# ----------------------------------------------------------------------------
if __name__ == "__main__":
    # INIT_FFC_BN_ACT(in_channels=4, out_channels=8, kernel_size=3, padding=1, stride=1, bias=False)
    N, C_IN, H, W = 2, 4, 16, 16
    C_OUT, K, STRIDE, PAD = 8, 3, 1, 1

    key = jax.random.PRNGKey(0)
    kx, kw = jax.random.split(key)

    x = jax.random.normal(kx, (N, C_IN, H, W), dtype=jnp.float32)

    # Deterministic params mimicking PyTorch defaults:
    # Conv2d kaiming_uniform(a=sqrt(5)) -> U(-1/sqrt(fan_in), 1/sqrt(fan_in)); bias=False.
    fan_in = C_IN * K * K
    bound = 1.0 / float(fan_in) ** 0.5
    conv_weight = jax.random.uniform(kw, (C_OUT, C_IN, K, K),
                                     minval=-bound, maxval=bound, dtype=jnp.float32)
    # BatchNorm2d: gamma=1, beta=0.
    bn_gamma = jnp.ones((C_OUT,), dtype=jnp.float32)
    bn_beta = jnp.zeros((C_OUT,), dtype=jnp.float32)

    x_l = init_ffc_bn_act_forward(x, conv_weight, bn_gamma, bn_beta,
                                  kernel_size=K, stride=STRIDE, padding=PAD)
    x_g = 0  # module returns (x_l, 0)
    x_l = jax.block_until_ready(x_l)

    ref = _reference(x, conv_weight, bn_gamma, bn_beta, K, STRIDE, PAD)
    assert x_l.shape == (N, C_OUT, H, W), x_l.shape
    err = float(jnp.max(jnp.abs(x_l - ref)))
    # bf16 MXU inputs + bf16 intermediate y (f32 accumulation / f32 BN stats) vs f32 reference.
    assert err < 5e-2, err

    print("KERNEL_OK")
</pallas_src>

<mosaic_0001>
module attributes {stable_mosaic.version = 11 : i64} {
  func.func @_conv_stats_kernel(%arg0: i32, %arg1: i32, %arg2: memref<1x8x1024xbf16, #tpu.memory_space<vmem>>, %arg3: memref<1x8x1024xbf16, #tpu.memory_space<vmem>>, %arg4: memref<9x8x8xbf16, #tpu.memory_space<vmem>>, %arg5: memref<1x1024xf32, #tpu.memory_space<vmem>>, %arg6: memref<1x8x1024xbf16, #tpu.memory_space<vmem>>, %arg7: memref<1x8x128xf32, #tpu.memory_space<vmem>>, %arg8: memref<1x8x128xf32, #tpu.memory_space<vmem>>, %arg9: memref<8x2048xbf16, #tpu.memory_space<vmem>>) attributes {dimension_semantics = [#tpu.dimension_semantics<parallel>, #tpu.dimension_semantics<arbitrary>], iteration_bounds = array<i64: 2, 2>, scalar_prefetch = 0 : i64, scratch_operands = 1 : i64, tpu.core_type = #tpu.core_type<tc>, window_params = [{transform_indices = @transform_0, window_bounds = array<i64: 1, 8, 1024>}, {transform_indices = @transform_1, window_bounds = array<i64: 1, 8, 1024>}, {pipeline_mode = #tpu.pipeline_mode<synchronous>, transform_indices = @transform_2, window_bounds = array<i64: 9, 8, 8>}, {pipeline_mode = #tpu.pipeline_mode<synchronous>, transform_indices = @transform_3, window_bounds = array<i64: 1, 1024>}, {transform_indices = @transform_4, window_bounds = array<i64: 1, 8, 1024>}, {transform_indices = @transform_5, window_bounds = array<i64: 1, 8, 128>}, {transform_indices = @transform_6, window_bounds = array<i64: 1, 8, 128>}]} {
    %c0_i32 = arith.constant 0 : i32
    %0 = arith.cmpi eq, %arg1, %c0_i32 : i32
    %1 = arith.extui %0 : i1 to i32
    %c0_i32_0 = arith.constant 0 : i32
    %2 = arith.cmpi ne, %1, %c0_i32_0 : i32
    scf.if %2 {
      %cst_68 = arith.constant 0.000000e+00 : f32
      %76 = vector.broadcast %cst_68 : f32 to vector<1x8x128xf32>
      %c0_69 = arith.constant 0 : index
      %c0_70 = arith.constant 0 : index
      %c0_71 = arith.constant 0 : index
      %77 = vector.load %arg7[%c0_69, %c0_70, %c0_71] : memref<1x8x128xf32, #tpu.memory_space<vmem>>, vector<1x8x128xf32>
      tpu.vector_store %arg7[%c0_69, %c0_70, %c0_71], %76 {strides = array<i32>} : memref<1x8x128xf32, #tpu.memory_space<vmem>>, vector<1x8x128xf32>,
      %cst_72 = arith.constant 0.000000e+00 : f32
      %78 = vector.broadcast %cst_72 : f32 to vector<1x8x128xf32>
      %c0_73 = arith.constant 0 : index
      %c0_74 = arith.constant 0 : index
      %c0_75 = arith.constant 0 : index
      %79 = vector.load %arg8[%c0_73, %c0_74, %c0_75] : memref<1x8x128xf32, #tpu.memory_space<vmem>>, vector<1x8x128xf32>
      tpu.vector_store %arg8[%c0_73, %c0_74, %c0_75], %78 {strides = array<i32>} : memref<1x8x128xf32, #tpu.memory_space<vmem>>, vector<1x8x128xf32>,
    } else {
    }
    %c0 = arith.constant 0 : index
    %c0_1 = arith.constant 0 : index
    %c0_2 = arith.constant 0 : index
    %3 = vector.load %arg2[%c0, %c0_1, %c0_2] : memref<1x8x1024xbf16, #tpu.memory_space<vmem>>, vector<1x8x1024xbf16>
    %4 = vector.shape_cast %3 : vector<1x8x1024xbf16> to vector<8x1024xbf16>
    %c0_3 = arith.constant 0 : index
    %c0_4 = arith.constant 0 : index
    %5 = vector.load %arg9[%c0_3, %c0_4] : memref<8x2048xbf16, #tpu.memory_space<vmem>>, vector<8x1024xbf16>
    tpu.vector_store %arg9[%c0_3, %c0_4], %4 {strides = array<i32>} : memref<8x2048xbf16, #tpu.memory_space<vmem>>, vector<8x1024xbf16>,
    %c0_5 = arith.constant 0 : index
    %c0_6 = arith.constant 0 : index
    %c0_7 = arith.constant 0 : index
    %6 = vector.load %arg3[%c0_5, %c0_6, %c0_7] : memref<1x8x1024xbf16, #tpu.memory_space<vmem>>, vector<1x8x1024xbf16>
    %7 = vector.shape_cast %6 : vector<1x8x1024xbf16> to vector<8x1024xbf16>
    %c0_8 = arith.constant 0 : index
    %c1024 = arith.constant 1024 : index
    %8 = vector.load %arg9[%c0_8, %c1024] : memref<8x2048xbf16, #tpu.memory_space<vmem>>, vector<8x1024xbf16>
    tpu.vector_store %arg9[%c0_8, %c1024], %7 {strides = array<i32>} : memref<8x2048xbf16, #tpu.memory_space<vmem>>, vector<8x1024xbf16>,
    %cst = arith.constant 0.000000e+00 : f32
    %9 = vector.broadcast %cst : f32 to vector<8x1024xf32>
    %c0_9 = arith.constant 0 : index
    %c0_10 = arith.constant 0 : index
    %10 = vector.load %arg9[%c0_9, %c0_10] : memref<8x2048xbf16, #tpu.memory_space<vmem>>, vector<8x1024xbf16>
    %c0_11 = arith.constant 0 : index
    %c0_12 = arith.constant 0 : index
    %c0_13 = arith.constant 0 : index
    %11 = vector.load %arg4[%c0_11, %c0_12, %c0_13] : memref<9x8x8xbf16, #tpu.memory_space<vmem>>, vector<1x8x8xbf16>
    %12 = vector.shape_cast %11 : vector<1x8x8xbf16> to vector<8x8xbf16>
    %cst_14 = arith.constant dense<0.000000e+00> : vector<8x1024xf32>
    %13 = tpu.matmul %12, %10, %cst_14 {dimension_numbers = #tpu.dot_dimension_numbers<[1], [0], [0], [1], [0, 0, 1, 1], [], []>} : vector<8x8xbf16>, vector<8x1024xbf16>, vector<8x1024xf32> -> vector<8x1024xf32>
    %14 = arith.addf %9, %13 : vector<8x1024xf32>
    %c0_15 = arith.constant 0 : index
    %c1 = arith.constant 1 : index
    %15 = vector.load %arg9[%c0_15, %c1] : memref<8x2048xbf16, #tpu.memory_space<vmem>>, vector<8x1024xbf16>
    %c1_16 = arith.constant 1 : index
    %c0_17 = arith.constant 0 : index
    %c0_18 = arith.constant 0 : index
    %16 = vector.load %arg4[%c1_16, %c0_17, %c0_18] : memref<9x8x8xbf16, #tpu.memory_space<vmem>>, vector<1x8x8xbf16>
    %17 = vector.shape_cast %16 : vector<1x8x8xbf16> to vector<8x8xbf16>
    %cst_19 = arith.constant dense<0.000000e+00> : vector<8x1024xf32>
    %18 = tpu.matmul %17, %15, %cst_19 {dimension_numbers = #tpu.dot_dimension_numbers<[1], [0], [0], [1], [0, 0, 1, 1], [], []>} : vector<8x8xbf16>, vector<8x1024xbf16>, vector<8x1024xf32> -> vector<8x1024xf32>
    %19 = arith.addf %14, %18 : vector<8x1024xf32>
    %c0_20 = arith.constant 0 : index
    %c2 = arith.constant 2 : index
    %20 = vector.load %arg9[%c0_20, %c2] : memref<8x2048xbf16, #tpu.memory_space<vmem>>, vector<8x1024xbf16>
    %c2_21 = arith.constant 2 : index
    %c0_22 = arith.constant 0 : index
    %c0_23 = arith.constant 0 : index
    %21 = vector.load %arg4[%c2_21, %c0_22, %c0_23] : memref<9x8x8xbf16, #tpu.memory_space<vmem>>, vector<1x8x8xbf16>
    %22 = vector.shape_cast %21 : vector<1x8x8xbf16> to vector<8x8xbf16>
    %cst_24 = arith.constant dense<0.000000e+00> : vector<8x1024xf32>
    %23 = tpu.matmul %22, %20, %cst_24 {dimension_numbers = #tpu.dot_dimension_numbers<[1], [0], [0], [1], [0, 0, 1, 1], [], []>} : vector<8x8xbf16>, vector<8x1024xbf16>, vector<8x1024xf32> -> vector<8x1024xf32>
    %24 = arith.addf %19, %23 : vector<8x1024xf32>
    %c0_25 = arith.constant 0 : index
    %c128 = arith.constant 128 : index
    %25 = vector.load %arg9[%c0_25, %c128] : memref<8x2048xbf16, #tpu.memory_space<vmem>>, vector<8x1024xbf16>
    %c3 = arith.constant 3 : index
    %c0_26 = arith.constant 0 : index
    %c0_27 = arith.constant 0 : index
    %26 = vector.load %arg4[%c3, %c0_26, %c0_27] : memref<9x8x8xbf16, #tpu.memory_space<vmem>>, vector<1x8x8xbf16>
    %27 = vector.shape_cast %26 : vector<1x8x8xbf16> to vector<8x8xbf16>
    %cst_28 = arith.constant dense<0.000000e+00> : vector<8x1024xf32>
    %28 = tpu.matmul %27, %25, %cst_28 {dimension_numbers = #tpu.dot_dimension_numbers<[1], [0], [0], [1], [0, 0, 1, 1], [], []>} : vector<8x8xbf16>, vector<8x1024xbf16>, vector<8x1024xf32> -> vector<8x1024xf32>
    %29 = arith.addf %24, %28 : vector<8x1024xf32>
    %c0_29 = arith.constant 0 : index
    %c129 = arith.constant 129 : index
    %30 = vector.load %arg9[%c0_29, %c129] : memref<8x2048xbf16, #tpu.memory_space<vmem>>, vector<8x1024xbf16>
    %c4 = arith.constant 4 : index
    %c0_30 = arith.constant 0 : index
    %c0_31 = arith.constant 0 : index
    %31 = vector.load %arg4[%c4, %c0_30, %c0_31] : memref<9x8x8xbf16, #tpu.memory_space<vmem>>, vector<1x8x8xbf16>
    %32 = vector.shape_cast %31 : vector<1x8x8xbf16> to vector<8x8xbf16>
    %cst_32 = arith.constant dense<0.000000e+00> : vector<8x1024xf32>
    %33 = tpu.matmul %32, %30, %cst_32 {dimension_numbers = #tpu.dot_dimension_numbers<[1], [0], [0], [1], [0, 0, 1, 1], [], []>} : vector<8x8xbf16>, vector<8x1024xbf16>, vector<8x1024xf32> -> vector<8x1024xf32>
    %34 = arith.addf %29, %33 : vector<8x1024xf32>
    %c0_33 = arith.constant 0 : index
    %c130 = arith.constant 130 : index
    %35 = vector.load %arg9[%c0_33, %c130] : memref<8x2048xbf16, #tpu.memory_space<vmem>>, vector<8x1024xbf16>
    %c5 = arith.constant 5 : index
    %c0_34 = arith.constant 0 : index
    %c0_35 = arith.constant 0 : index
    %36 = vector.load %arg4[%c5, %c0_34, %c0_35] : memref<9x8x8xbf16, #tpu.memory_space<vmem>>, vector<1x8x8xbf16>
    %37 = vector.shape_cast %36 : vector<1x8x8xbf16> to vector<8x8xbf16>
    %cst_36 = arith.constant dense<0.000000e+00> : vector<8x1024xf32>
    %38 = tpu.matmul %37, %35, %cst_36 {dimension_numbers = #tpu.dot_dimension_numbers<[1], [0], [0], [1], [0, 0, 1, 1], [], []>} : vector<8x8xbf16>, vector<8x1024xbf16>, vector<8x1024xf32> -> vector<8x1024xf32>
    %39 = arith.addf %34, %38 : vector<8x1024xf32>
    %c0_37 = arith.constant 0 : index
    %c256 = arith.constant 256 : index
    %40 = vector.load %arg9[%c0_37, %c256] : memref<8x2048xbf16, #tpu.memory_space<vmem>>, vector<8x1024xbf16>
    %c6 = arith.constant 6 : index
    %c0_38 = arith.constant 0 : index
    %c0_39 = arith.constant 0 : index
    %41 = vector.load %arg4[%c6, %c0_38, %c0_39] : memref<9x8x8xbf16, #tpu.memory_space<vmem>>, vector<1x8x8xbf16>
    %42 = vector.shape_cast %41 : vector<1x8x8xbf16> to vector<8x8xbf16>
    %cst_40 = arith.constant dense<0.000000e+00> : vector<8x1024xf32>
    %43 = tpu.matmul %42, %40, %cst_40 {dimension_numbers = #tpu.dot_dimension_numbers<[1], [0], [0], [1], [0, 0, 1, 1], [], []>} : vector<8x8xbf16>, vector<8x1024xbf16>, vector<8x1024xf32> -> vector<8x1024xf32>
    %44 = arith.addf %39, %43 : vector<8x1024xf32>
    %c0_41 = arith.constant 0 : index
    %c257 = arith.constant 257 : index
    %45 = vector.load %arg9[%c0_41, %c257] : memref<8x2048xbf16, #tpu.memory_space<vmem>>, vector<8x1024xbf16>
    %c7 = arith.constant 7 : index
    %c0_42 = arith.constant 0 : index
    %c0_43 = arith.constant 0 : index
    %46 = vector.load %arg4[%c7, %c0_42, %c0_43] : memref<9x8x8xbf16, #tpu.memory_space<vmem>>, vector<1x8x8xbf16>
    %47 = vector.shape_cast %46 : vector<1x8x8xbf16> to vector<8x8xbf16>
    %cst_44 = arith.constant dense<0.000000e+00> : vector<8x1024xf32>
    %48 = tpu.matmul %47, %45, %cst_44 {dimension_numbers = #tpu.dot_dimension_numbers<[1], [0], [0], [1], [0, 0, 1, 1], [], []>} : vector<8x8xbf16>, vector<8x1024xbf16>, vector<8x1024xf32> -> vector<8x1024xf32>
    %49 = arith.addf %44, %48 : vector<8x1024xf32>
    %c0_45 = arith.constant 0 : index
    %c258 = arith.constant 258 : index
    %50 = vector.load %arg9[%c0_45, %c258] : memref<8x2048xbf16, #tpu.memory_space<vmem>>, vector<8x1024xbf16>
    %c8 = arith.constant 8 : index
    %c0_46 = arith.constant 0 : index
    %c0_47 = arith.constant 0 : index
    %51 = vector.load %arg4[%c8, %c0_46, %c0_47] : memref<9x8x8xbf16, #tpu.memory_space<vmem>>, vector<1x8x8xbf16>
    %52 = vector.shape_cast %51 : vector<1x8x8xbf16> to vector<8x8xbf16>
    %cst_48 = arith.constant dense<0.000000e+00> : vector<8x1024xf32>
    %53 = tpu.matmul %52, %50, %cst_48 {dimension_numbers = #tpu.dot_dimension_numbers<[1], [0], [0], [1], [0, 0, 1, 1], [], []>} : vector<8x8xbf16>, vector<8x1024xbf16>, vector<8x1024xf32> -> vector<8x1024xf32>
    %54 = arith.addf %49, %53 : vector<8x1024xf32>
    %c0_49 = arith.constant 0 : index
    %c0_50 = arith.constant 0 : index
    %55 = vector.load %arg5[%c0_49, %c0_50] : memref<1x1024xf32, #tpu.memory_space<vmem>>, vector<1x1024xf32>
    %56 = vector.broadcast %55 : vector<1x1024xf32> to vector<8x1024xf32>
    %57 = arith.mulf %54, %56 : vector<8x1024xf32>
    %c0_51 = arith.constant 0 : index
    %c0_52 = arith.constant 0 : index
    %c0_53 = arith.constant 0 : index
    %58 = vector.load %arg7[%c0_51, %c0_52, %c0_53] : memref<1x8x128xf32, #tpu.memory_space<vmem>>, vector<1x8x128xf32>
    %cst_54 = arith.constant dense<0.000000e+00> : vector<8xf32>
    %59 = vector.multi_reduction <add>, %57, %cst_54 [1] : vector<8x1024xf32> to vector<8xf32>
    %60 = vector.shape_cast %59 : vector<8xf32> to vector<8x1xf32>
    %61 = vector.shape_cast %60 : vector<8x1xf32> to vector<1x8x1xf32>
    %62 = vector.broadcast %61 : vector<1x8x1xf32> to vector<1x8x128xf32>
    %63 = arith.addf %58, %62 : vector<1x8x128xf32>
    %c0_55 = arith.constant 0 : index
    %c0_56 = arith.constant 0 : index
    %c0_57 = arith.constant 0 : index
    %64 = vector.load %arg7[%c0_55, %c0_56, %c0_57] : memref<1x8x128xf32, #tpu.memory_space<vmem>>, vector<1x8x128xf32>
    tpu.vector_store %arg7[%c0_55, %c0_56, %c0_57], %63 {strides = array<i32>} : memref<1x8x128xf32, #tpu.memory_space<vmem>>, vector<1x8x128xf32>,
    %c0_58 = arith.constant 0 : index
    %c0_59 = arith.constant 0 : index
    %c0_60 = arith.constant 0 : index
    %65 = vector.load %arg8[%c0_58, %c0_59, %c0_60] : memref<1x8x128xf32, #tpu.memory_space<vmem>>, vector<1x8x128xf32>
    %66 = arith.mulf %57, %54 : vector<8x1024xf32>
    %cst_61 = arith.constant dense<0.000000e+00> : vector<8xf32>
    %67 = vector.multi_reduction <add>, %66, %cst_61 [1] : vector<8x1024xf32> to vector<8xf32>
    %68 = vector.shape_cast %67 : vector<8xf32> to vector<8x1xf32>
    %69 = vector.shape_cast %68 : vector<8x1xf32> to vector<1x8x1xf32>
    %70 = vector.broadcast %69 : vector<1x8x1xf32> to vector<1x8x128xf32>
    %71 = arith.addf %65, %70 : vector<1x8x128xf32>
    %c0_62 = arith.constant 0 : index
    %c0_63 = arith.constant 0 : index
    %c0_64 = arith.constant 0 : index
    %72 = vector.load %arg8[%c0_62, %c0_63, %c0_64] : memref<1x8x128xf32, #tpu.memory_space<vmem>>, vector<1x8x128xf32>
    tpu.vector_store %arg8[%c0_62, %c0_63, %c0_64], %71 {strides = array<i32>} : memref<1x8x128xf32, #tpu.memory_space<vmem>>, vector<1x8x128xf32>,
    %73 = arith.truncf %54 : vector<8x1024xf32> to vector<8x1024xbf16>
    %74 = vector.shape_cast %73 : vector<8x1024xbf16> to vector<1x8x1024xbf16>
    %c0_65 = arith.constant 0 : index
    %c0_66 = arith.constant 0 : index
    %c0_67 = arith.constant 0 : index
    %75 = vector.load %arg6[%c0_65, %c0_66, %c0_67] : memref<1x8x1024xbf16, #tpu.memory_space<vmem>>, vector<1x8x1024xbf16>
    tpu.vector_store %arg6[%c0_65, %c0_66, %c0_67], %74 {strides = array<i32>} : memref<1x8x1024xbf16, #tpu.memory_space<vmem>>, vector<1x8x1024xbf16>,
    return
  }
  func.func @transform_0(%arg0: i32, %arg1: i32) -> (i32, i32, i32) {
    %c0_i32 = arith.constant 0 : i32
    %c0_i32_0 = arith.constant 0 : i32
    return %arg0, %c0_i32, %arg1 : i32, i32, i32
  }
  func.func @transform_1(%arg0: i32, %arg1: i32) -> (i32, i32, i32) {
    %c1_i32 = arith.constant 1 : i32
    %0 = arith.addi %arg1, %c1_i32 : i32
    %c0_i32 = arith.constant 0 : i32
    %c0_i32_0 = arith.constant 0 : i32
    return %arg0, %c0_i32, %0 : i32, i32, i32
  }
  func.func @transform_2(%arg0: i32, %arg1: i32) -> (i32, i32, i32) {
    %c0_i32 = arith.constant 0 : i32
    %c0_i32_0 = arith.constant 0 : i32
    %c0_i32_1 = arith.constant 0 : i32
    %c0_i32_2 = arith.constant 0 : i32
    return %c0_i32, %c0_i32_0, %c0_i32_1 : i32, i32, i32
  }
  func.func @transform_3(%arg0: i32, %arg1: i32) -> (i32, i32) {
    %c0_i32 = arith.constant 0 : i32
    %c0_i32_0 = arith.constant 0 : i32
    %c0_i32_1 = arith.constant 0 : i32
    return %c0_i32, %c0_i32_0 : i32, i32
  }
  func.func @transform_4(%arg0: i32, %arg1: i32) -> (i32, i32, i32) {
    %c0_i32 = arith.constant 0 : i32
    %c0_i32_0 = arith.constant 0 : i32
    return %arg0, %c0_i32, %arg1 : i32, i32, i32
  }
  func.func @transform_5(%arg0: i32, %arg1: i32) -> (i32, i32, i32) {
    %c0_i32 = arith.constant 0 : i32
    %c0_i32_0 = arith.constant 0 : i32
    %c0_i32_1 = arith.constant 0 : i32
    return %arg0, %c0_i32, %c0_i32_0 : i32, i32, i32
  }
  func.func @transform_6(%arg0: i32, %arg1: i32) -> (i32, i32, i32) {
    %c0_i32 = arith.constant 0 : i32
    %c0_i32_0 = arith.constant 0 : i32
    %c0_i32_1 = arith.constant 0 : i32
    return %arg0, %c0_i32, %c0_i32_0 : i32, i32, i32
  }
}

module attributes {stable_mosaic.version = 11 : i64} {
  func.func @_bn_act_kernel(%arg0: i32, %arg1: i32, %arg2: memref<1x8x8x128xbf16, #tpu.memory_space<vmem>>, %arg3: memref<8x1x1xf32, #tpu.memory_space<vmem>>, %arg4: memref<8x1x1xf32, #tpu.memory_space<vmem>>, %arg5: memref<1x8x8x16xf32, #tpu.memory_space<vmem>>) attributes {dimension_semantics = [#tpu.dimension_semantics<parallel>, #tpu.dimension_semantics<parallel>], iteration_bounds = array<i64: 2, 2>, scalar_prefetch = 0 : i64, scratch_operands = 0 : i64, tpu.core_type = #tpu.core_type<tc>, window_params = [{transform_indices = @transform_0, window_bounds = array<i64: 1, 8, 8, 128>}, {pipeline_mode = #tpu.pipeline_mode<synchronous>, transform_indices = @transform_1, window_bounds = array<i64: 8, 1, 1>}, {pipeline_mode = #tpu.pipeline_mode<synchronous>, transform_indices = @transform_2, window_bounds = array<i64: 8, 1, 1>}, {transform_indices = @transform_3, window_bounds = array<i64: 1, 8, 8, 16>}]} {
    %c0 = arith.constant 0 : index
    %c0_0 = arith.constant 0 : index
    %c0_1 = arith.constant 0 : index
    %c0_2 = arith.constant 0 : index
    %0 = vector.load %arg2[%c0, %c0_0, %c0_1, %c0_2] : memref<1x8x8x128xbf16, #tpu.memory_space<vmem>>, vector<1x8x8x128xbf16>
    %1 = vector.extract_strided_slice %0 {offsets = [0, 0, 0, 0], sizes = [1, 8, 8, 16], strides = [1, 1, 1, 1]} : vector<1x8x8x128xbf16> to vector<1x8x8x16xbf16>
    %2 = vector.shape_cast %1 : vector<1x8x8x16xbf16> to vector<8x8x16xbf16>
    %3 = arith.extf %2 : vector<8x8x16xbf16> to vector<8x8x16xf32>
    %c0_3 = arith.constant 0 : index
    %c0_4 = arith.constant 0 : index
    %c0_5 = arith.constant 0 : index
    %4 = vector.load %arg3[%c0_3, %c0_4, %c0_5] : memref<8x1x1xf32, #tpu.memory_space<vmem>>, vector<8x1x1xf32>
    %5 = vector.broadcast %4 : vector<8x1x1xf32> to vector<8x8x16xf32>
    %6 = arith.mulf %3, %5 : vector<8x8x16xf32>
    %c0_6 = arith.constant 0 : index
    %c0_7 = arith.constant 0 : index
    %c0_8 = arith.constant 0 : index
    %7 = vector.load %arg4[%c0_6, %c0_7, %c0_8] : memref<8x1x1xf32, #tpu.memory_space<vmem>>, vector<8x1x1xf32>
    %8 = vector.broadcast %7 : vector<8x1x1xf32> to vector<8x8x16xf32>
    %9 = arith.addf %6, %8 : vector<8x8x16xf32>
    %10 = vector.shape_cast %9 : vector<8x8x16xf32> to vector<1x8x8x16xf32>
    %c0_9 = arith.constant 0 : index
    %c0_10 = arith.constant 0 : index
    %c0_11 = arith.constant 0 : index
    %c0_12 = arith.constant 0 : index
    %11 = vector.load %arg5[%c0_9, %c0_10, %c0_11, %c0_12] : memref<1x8x8x16xf32, #tpu.memory_space<vmem>>, vector<1x8x8x16xf32>
    tpu.vector_store %arg5[%c0_9, %c0_10, %c0_11, %c0_12], %10 {strides = array<i32>} : memref<1x8x8x16xf32, #tpu.memory_space<vmem>>, vector<1x8x8x16xf32>,
    return
  }
  func.func @transform_0(%arg0: i32, %arg1: i32) -> (i32, i32, i32, i32) {
    %c0_i32 = arith.constant 0 : i32
    %c0_i32_0 = arith.constant 0 : i32
    %c0_i32_1 = arith.constant 0 : i32
    return %arg0, %c0_i32, %arg1, %c0_i32_0 : i32, i32, i32, i32
  }
  func.func @transform_1(%arg0: i32, %arg1: i32) -> (i32, i32, i32) {
    %c0_i32 = arith.constant 0 : i32
    %c0_i32_0 = arith.constant 0 : i32
    %c0_i32_1 = arith.constant 0 : i32
    %c0_i32_2 = arith.constant 0 : i32
    return %c0_i32, %c0_i32_0, %c0_i32_1 : i32, i32, i32
  }
  func.func @transform_2(%arg0: i32, %arg1: i32) -> (i32, i32, i32) {
    %c0_i32 = arith.constant 0 : i32
    %c0_i32_0 = arith.constant 0 : i32
    %c0_i32_1 = arith.constant 0 : i32
    %c0_i32_2 = arith.constant 0 : i32
    return %c0_i32, %c0_i32_0, %c0_i32_1 : i32, i32, i32
  }
  func.func @transform_3(%arg0: i32, %arg1: i32) -> (i32, i32, i32, i32) {
    %c0_i32 = arith.constant 0 : i32
    %c0_i32_0 = arith.constant 0 : i32
    %c0_i32_1 = arith.constant 0 : i32
    return %arg0, %c0_i32, %arg1, %c0_i32_0 : i32, i32, i32, i32
  }
}

</mosaic_0001>

<llo_original>
// kernel: init_ffc_bn_act_forward.3
$region0: #{init_ffc_bn_act_forward.3}
  #allocation0 [shape = 'u32[]', space=smem, size = 0x4, offset = 0x4, fixed_abs, tag = 'smem constant byte address 0x4 - core index']
  #allocation1 [shape = 'u32[72,128]{1,0:T(1,128)}', space=vmem, size = 0x9000, scoped, tag = 'internal scratch']
  %s0 = inlined_call_operand.vmem [shape: bf16[2,8,16,128], index: 0, kind: input, shape index: {}]
  %s1 = inlined_call_operand.vmem [shape: f32[8,1,1], index: 1, kind: input, shape index: {}]
  %s2 = inlined_call_operand.vmem [shape: f32[8,1,1], index: 2, kind: input, shape index: {}]
  %s3 = inlined_call_operand.hbm [shape: f32[2,8,16,16], index: 3, kind: output, shape index: {}]
  %s4 = sld [smem:[#allocation0]]
  $region86: #{init_ffc_bn_act_forward.3} parent=0
    _
  %s6 = ssub.s32 1, %s4
  %s7 = scalar_select 0, %s6, %s4
  $region1: #{init_ffc_bn_act_forward.3} parent=0
    #allocation2 [shape = 'u8[32768]{0}', space=vmem, size = 0x8000, scoped, tag = 'input window, operand 0']
    #allocation3 [shape = 'u8[65536]{0}', space=vmem, size = 0x10000, scoped, tag = 'output window, operand 0']
    #allocation4 [shape = 's32[2]{0}', space=sflag, size = 0x8, scoped, tag = 'scoped memory for init_ffc_bn_act_forward.3']
    %8 = vsyncpa [#allocation4], 0
    %s9 = scalar_lea.sflag [#allocation4], 1
    %10 = vsyncpa %s9, 0
    loop: start=0, step=1, limit=6
    $region2: #{init_ffc_bn_act_forward.3} parent=1 // loop_pre_header
      _
    $region3: #{init_ffc_bn_act_forward.3} parent=1 // loop_header
      %s12 = sphi 0, %s16
      %p13 = scmp.ge.s32.totalorder %s12, 6
      %s19 = sphi 0, %s31
      %s20 = sphi 0, %s27
      %s21 = sphi 0, %s19
      %s22 = sphi 0, %s20
      %s23 = sphi 0, %s21
      %s24 = sphi 0, %s22
      %s36 = sphi 0, %s38
      %s39 = sphi 0, %s36
      %s40 = sphi 0, %s39
      %s56 = sphi 0, %s40
      %s60 = sphi 0, %s60
      %s62 = sphi 0, %s60
      %s63 = sphi 0, %s62
      %s77 = sphi 0, %s63
      %s81 = sphi 0, %s81
      %s83 = sphi 0, %s81
      %s84 = sphi 0, %s83
      %s98 = sphi 0, %s84
      %s106 = sphi 0, %s108
      %s109 = sphi 0, %s106
      %s110 = sphi 0, %s109
      %s126 = sphi 0, %s110
    $region4: #{init_ffc_bn_act_forward.3} parent=1 // loop_header_branch
      %15 = sbr.rel (%p13) target = $region8
    $region5: #{init_ffc_bn_act_forward.3} parent=1 // loop_body
      %s17 = ssub.s32 %s12, 1
      %s18 = ssub.s32 %s12, 2
      %s25 = sadd.s32 1, %s20
      %p26 = scmp.ge.s32.totalorder %s25, 2
      %s27 = scalar_select %p26, 0, %s25
      %s28 = sadd.s32 1, %s19
      %s29 = scalar_select %p26, %s28, %s19
      %p30 = scmp.ge.s32.totalorder %s29, 2
      %s31 = scalar_select %p30, 0, %s29
      %s32 = ssub.s32 %s19, %s31
      %s33 = ssub.s32 %s20, %s27
      %s34 = sor.u32 %s32, %s33
      %p35 = scmp.eq.s32.totalorder %s34, 0
      %s37 = sadd.s32 %s36, 1
      %s38 = scalar_select %p35, %s36, %s37
      %p41 = pneg %p35
      %p42 = scmp.eq.s32.totalorder %s12, 3
      %p43 = por %p41, %p42
      %p44 = scmp.ne.s32.totalorder %s36, %s39
      %p45 = scmp.eq.s32.totalorder %s12, 0
      %p46 = por %p44, %p45
      %p47 = scmp.ne.s32.totalorder %s36, %s39
      %p48 = scmp.eq.s32.totalorder %s17, 3
      %p49 = por %p47, %p48
      %p50 = scmp.ne.s32.totalorder %s39, %s40
      %p51 = scmp.eq.s32.totalorder %s17, 0
      %p52 = por %p50, %p51
      %p53 = scmp.ne.s32.totalorder %s39, %s40
      %p54 = scmp.eq.s32.totalorder %s18, 3
      %p55 = por %p53, %p54
      %p57 = scmp.ne.s32.totalorder %s40, %s56
      %p58 = scmp.eq.s32.totalorder %s18, 0
      %p59 = por %p57, %p58
      %s61 = sadd.s32 %s60, 1
      %p64 = scmp.eq.s32.totalorder %s12, 3
      %p65 = scmp.ne.s32.totalorder %s60, %s62
      %p66 = scmp.eq.s32.totalorder %s12, 0
      %p67 = por %p65, %p66
      %p68 = scmp.ne.s32.totalorder %s60, %s62
      %p69 = scmp.eq.s32.totalorder %s17, 3
      %p70 = por %p68, %p69
      %p71 = scmp.ne.s32.totalorder %s62, %s63
      %p72 = scmp.eq.s32.totalorder %s17, 0
      %p73 = por %p71, %p72
      %p74 = scmp.ne.s32.totalorder %s62, %s63
      %p75 = scmp.eq.s32.totalorder %s18, 3
      %p76 = por %p74, %p75
      %p78 = scmp.ne.s32.totalorder %s63, %s77
      %p79 = scmp.eq.s32.totalorder %s18, 0
      %p80 = por %p78, %p79
      %s82 = sadd.s32 %s81, 1
      %p85 = scmp.eq.s32.totalorder %s12, 3
      %p86 = scmp.ne.s32.totalorder %s81, %s83
      %p87 = scmp.eq.s32.totalorder %s12, 0
      %p88 = por %p86, %p87
      %p89 = scmp.ne.s32.totalorder %s81, %s83
      %p90 = scmp.eq.s32.totalorder %s17, 3
      %p91 = por %p89, %p90
      %p92 = scmp.ne.s32.totalorder %s83, %s84
      %p93 = scmp.eq.s32.totalorder %s17, 0
      %p94 = por %p92, %p93
      %p95 = scmp.ne.s32.totalorder %s83, %s84
      %p96 = scmp.eq.s32.totalorder %s18, 3
      %p97 = por %p95, %p96
      %p99 = scmp.ne.s32.totalorder %s84, %s98
      %p100 = scmp.eq.s32.totalorder %s18, 0
      %p101 = por %p99, %p100
      %s102 = ssub.s32 %s19, %s31
      %s103 = ssub.s32 %s20, %s27
      %s104 = sor.u32 %s102, %s103
      %p105 = scmp.eq.s32.totalorder %s104, 0
      %s107 = sadd.s32 %s106, 1
      %s108 = scalar_select %p105, %s106, %s107
      %p111 = pneg %p105
      %p112 = scmp.eq.s32.totalorder %s12, 3
      %p113 = por %p111, %p112
      %p114 = scmp.ne.s32.totalorder %s106, %s109
      %p115 = scmp.eq.s32.totalorder %s12, 0
      %p116 = por %p114, %p115
      %p117 = scmp.ne.s32.totalorder %s106, %s109
      %p118 = scmp.eq.s32.totalorder %s17, 3
      %p119 = por %p117, %p118
      %p120 = scmp.ne.s32.totalorder %s109, %s110
      %p121 = scmp.eq.s32.totalorder %s17, 0
      %p122 = por %p120, %p121
      %p123 = scmp.ne.s32.totalorder %s109, %s110
      %p124 = scmp.eq.s32.totalorder %s18, 3
      %p125 = por %p123, %p124
      %p127 = scmp.ne.s32.totalorder %s110, %s126
      %p128 = scmp.eq.s32.totalorder %s18, 0
      %p129 = por %p127, %p128
      %p130 = scmp.le.s32.totalorder 1, %s12
      %p131 = scmp.lt.s32.totalorder %s12, 5
      %p132 = pnand %p130, %p131
      %p133 = pneg %p132
      // Predicated region
      $region9: #{init_ffc_bn_act_forward.3} parent=5 // pred_check
        _
      $region10: #{init_ffc_bn_act_forward.3} parent=5 // pred_check_branch
        %135 = sbr.rel (%p132) target = $region12
      $region11: #{init_ffc_bn_act_forward.3} parent=5 // pred_region
        %s136 = ssub.s32 %s12, 1
        // Predicated region
        $region13: #{init_ffc_bn_act_forward.3} parent=11 // pred_check
          %p137 = pneg %p73
        $region14: #{init_ffc_bn_act_forward.3} parent=11 // pred_check_branch
          %139 = sbr.rel (%p137) target = $region16
        $region15: #{init_ffc_bn_act_forward.3} parent=11 // pred_region
          _
        $region16: #{init_ffc_bn_act_forward.3} parent=11 // pred_fallthru
          _
        // Predicated region
        $region17: #{init_ffc_bn_act_forward.3} parent=11 // pred_check
          %p140 = pneg %p94
        $region18: #{init_ffc_bn_act_forward.3} parent=11 // pred_check_branch
          %142 = sbr.rel (%p140) target = $region20
        $region19: #{init_ffc_bn_act_forward.3} parent=11 // pred_region
          _
        $region20: #{init_ffc_bn_act_forward.3} parent=11 // pred_fallthru
          _
      $region12: #{init_ffc_bn_act_forward.3} parent=5 // pred_fallthru
        _
      %p143 = scmp.lt.s32.totalorder %s12, 4
      // Predicated region
      $region21: #{init_ffc_bn_act_forward.3} parent=5 // pred_check
        %p144 = pneg %p143
      $region22: #{init_ffc_bn_act_forward.3} parent=5 // pred_check_branch
        %146 = sbr.rel (%p144) target = $region24
      $region23: #{init_ffc_bn_act_forward.3} parent=5 // pred_region
        // Predicated region
        $region25: #{init_ffc_bn_act_forward.3} parent=23 // pred_check
          %p147 = pneg %p46
        $region26: #{init_ffc_bn_act_forward.3} parent=23 // pred_check_branch
          %149 = sbr.rel (%p147) target = $region28
        $region27: #{init_ffc_bn_act_forward.3} parent=23 // pred_region
          %s150 = sand.u32 %s36, 1
          %s151 = sand.u32 %s36, 1
          %s152 = smul.addr %s151, 32
          %s153 = scalar_lea.vmem [#allocation2], %s152
          %s154 = smul.addr %s19, 16
          %s155 = sadd.s32 %s20, %s154
          %s156 = smul.addr %s155, 4
          %s157 = scalar_lea.vmem %s0, %s156
          // Predicated region
          $region29: #{init_ffc_bn_act_forward.3} parent=27 // pred_check
            _
          $region30: #{init_ffc_bn_act_forward.3} parent=27 // pred_check_branch
            %159 = sbr.rel (0) target = $region32
          $region31: #{init_ffc_bn_act_forward.3} parent=27 // pred_region
            // Predicated region
            $region33: #{init_ffc_bn_act_forward.3} parent=31 // pred_check
              _
            $region34: #{init_ffc_bn_act_forward.3} parent=31 // pred_check_branch
              %161 = sbr.rel target = $region36
            $region35: #{init_ffc_bn_act_forward.3} parent=31 // pred_region
              // Predicated region
              $region48: #{init_ffc_bn_act_forward.3} parent=35 // pred_check
                _
              $region49: #{init_ffc_bn_act_forward.3} parent=35 // pred_check_branch
                %191 = sbr.rel (0) target = $region51
              $region50: #{init_ffc_bn_act_forward.3} parent=35 // pred_region
                loop: start=0, step=1, limit=1
                $region52: #{init_ffc_bn_act_forward.3} parent=50 // loop_pre_header
                  _
                $region53: #{init_ffc_bn_act_forward.3} parent=50 // loop_header
                  %s193 = sphi 0, %s197
                  %p194 = scmp.ge.s32.totalorder %s193, 1
                  %s198 = sphi %s157, %s157
                  %s199 = sphi %s153, %s153
                $region54: #{init_ffc_bn_act_forward.3} parent=50 // loop_header_branch
                  %196 = sbr.rel (%p194) target = $region58
                $region55: #{init_ffc_bn_act_forward.3} parent=50 // loop_body
                  _
                $region56: #{init_ffc_bn_act_forward.3} parent=50 // loop_footer
                  %s197 = sadd.s32 1, %s193
                $region57: #{init_ffc_bn_act_forward.3} parent=50 // loop_footer_branch
                  %192 = sbr.rel target = $region53
                $region58: #{init_ffc_bn_act_forward.3} parent=50 // loop_exit
                  _
                %s201 = ssub.s32 16, 1
                loop: start=0, step=1, limit=1
                $region59: #{init_ffc_bn_act_forward.3} parent=50 // loop_pre_header
                  _
                $region60: #{init_ffc_bn_act_forward.3} parent=50 // loop_header
                  %s203 = sphi 0, %s207
                  %p204 = scmp.ge.s32.totalorder %s203, 1
                  %s208 = sphi %s157, %s157
                  %s209 = sphi %s153, %s153
                $region61: #{init_ffc_bn_act_forward.3} parent=50 // loop_header_branch
                  %206 = sbr.rel (%p204) target = $region65
                $region62: #{init_ffc_bn_act_forward.3} parent=50 // loop_body
                  %v210 = vld [vmem:[%s208] sm:%s201]
                  %211 = vst [vmem:[%s209] sm:%s201] %v210
                  %v212 = vld [vmem:[%s208 + $0x8] sm:%s201]
                  %213 = vst [vmem:[%s209 + $0x4] sm:%s201] %v212
                  %v214 = vld [vmem:[%s208 + $0x10] sm:%s201]
                  %215 = vst [vmem:[%s209 + $0x8] sm:%s201] %v214
                  %v216 = vld [vmem:[%s208 + $0x18] sm:%s201]
                  %217 = vst [vmem:[%s209 + $0xc] sm:%s201] %v216
                  %v218 = vld [vmem:[%s208 + $0x20] sm:%s201]
                  %219 = vst [vmem:[%s209 + $0x10] sm:%s201] %v218
                  %v220 = vld [vmem:[%s208 + $0x28] sm:%s201]
                  %221 = vst [vmem:[%s209 + $0x14] sm:%s201] %v220
                  %v222 = vld [vmem:[%s208 + $0x30] sm:%s201]
                  %223 = vst [vmem:[%s209 + $0x18] sm:%s201] %v222
                  %v224 = vld [vmem:[%s208 + $0x38] sm:%s201]
                  %225 = vst [vmem:[%s209 + $0x1c] sm:%s201] %v224
                $region63: #{init_ffc_bn_act_forward.3} parent=50 // loop_footer
                  %s207 = sadd.s32 1, %s203
                $region64: #{init_ffc_bn_act_forward.3} parent=50 // loop_footer_branch
                  %202 = sbr.rel target = $region60
                $region65: #{init_ffc_bn_act_forward.3} parent=50 // loop_exit
                  _
              $region51: #{init_ffc_bn_act_forward.3} parent=35 // pred_fallthru
                _
            $region36: #{init_ffc_bn_act_forward.3} parent=31 // pred_fallthru
              _
            // Predicated region
            $region37: #{init_ffc_bn_act_forward.3} parent=31 // pred_check
              _
            $region38: #{init_ffc_bn_act_forward.3} parent=31 // pred_check_branch
              %163 = sbr.rel (0) target = $region40
            $region39: #{init_ffc_bn_act_forward.3} parent=31 // pred_region
              %s165 = ssub.s32 16, 1
              loop: start=0, step=1, limit=1
              $region41: #{init_ffc_bn_act_forward.3} parent=39 // loop_pre_header
                _
              $region42: #{init_ffc_bn_act_forward.3} parent=39 // loop_header
                %s167 = sphi 0, %s171
                %p168 = scmp.ge.s32.totalorder %s167, 1
                %s172 = sphi %s157, %s157
                %s173 = sphi %s153, %s153
              $region43: #{init_ffc_bn_act_forward.3} parent=39 // loop_header_branch
                %170 = sbr.rel (%p168) target = $region47
              $region44: #{init_ffc_bn_act_forward.3} parent=39 // loop_body
                %v174 = vld [vmem:[%s172] sm:%s165]
                %175 = vst [vmem:[%s173] sm:%s165] %v174
                %v176 = vld [vmem:[%s172 + $0x8] sm:%s165]
                %177 = vst [vmem:[%s173 + $0x4] sm:%s165] %v176
                %v178 = vld [vmem:[%s172 + $0x10] sm:%s165]
                %179 = vst [vmem:[%s173 + $0x8] sm:%s165] %v178
                %v180 = vld [vmem:[%s172 + $0x18] sm:%s165]
                %181 = vst [vmem:[%s173 + $0xc] sm:%s165] %v180
                %v182 = vld [vmem:[%s172 + $0x20] sm:%s165]
                %183 = vst [vmem:[%s173 + $0x10] sm:%s165] %v182
                %v184 = vld [vmem:[%s172 + $0x28] sm:%s165]
                %185 = vst [vmem:[%s173 + $0x14] sm:%s165] %v184
                %v186 = vld [vmem:[%s172 + $0x30] sm:%s165]
                %187 = vst [vmem:[%s173 + $0x18] sm:%s165] %v186
                %v188 = vld [vmem:[%s172 + $0x38] sm:%s165]
                %189 = vst [vmem:[%s173 + $0x1c] sm:%s165] %v188
              $region45: #{init_ffc_bn_act_forward.3} parent=39 // loop_footer
                %s171 = sadd.s32 1, %s167
              $region46: #{init_ffc_bn_act_forward.3} parent=39 // loop_footer_branch
                %166 = sbr.rel target = $region42
              $region47: #{init_ffc_bn_act_forward.3} parent=39 // loop_exit
                _
            $region40: #{init_ffc_bn_act_forward.3} parent=31 // pred_fallthru
              _
          $region32: #{init_ffc_bn_act_forward.3} parent=27 // pred_fallthru
            _
          %226 = vnop
        $region28: #{init_ffc_bn_act_forward.3} parent=23 // pred_fallthru
          _
      $region24: #{init_ffc_bn_act_forward.3} parent=5 // pred_fallthru
        _
      %p227 = scmp.le.s32.totalorder 1, %s12
      %p228 = scmp.lt.s32.totalorder %s12, 5
      %p229 = pnand %p227, %p228
      %p230 = pneg %p229
      // Predicated region
      $region66: #{init_ffc_bn_act_forward.3} parent=5 // pred_check
        _
      $region67: #{init_ffc_bn_act_forward.3} parent=5 // pred_check_branch
        %232 = sbr.rel (%p229) target = $region69
      $region68: #{init_ffc_bn_act_forward.3} parent=5 // pred_region
        %s233 = ssub.s32 %s12, 1
        %s234 = sand.u32 %s39, 1
        %s235 = sand.u32 %s39, 1
        %s236 = smul.addr %s235, 32
        %s237 = scalar_lea.vmem [#allocation2], %s236
        // Predicated region
        $region70: #{init_ffc_bn_act_forward.3} parent=68 // pred_check
          %p238 = pneg %p52
        $region71: #{init_ffc_bn_act_forward.3} parent=68 // pred_check_branch
          %240 = sbr.rel (%p238) target = $region73
        $region72: #{init_ffc_bn_act_forward.3} parent=68 // pred_region
          _
        $region73: #{init_ffc_bn_act_forward.3} parent=68 // pred_fallthru
          _
        %s241 = sand.u32 %s39, 1
        %s242 = sand.u32 %s39, 1
        %s243 = smul.addr %s242, 32
        %s244 = scalar_lea.vmem [#allocation2], %s243
        %p245 = pneg %p52
        %p246 = pneg %p49
        %p247 = pneg %p73
        %p248 = pneg %p70
        %p249 = pneg %p94
        %p250 = pneg %p91
        %p251 = pneg %p122
        %p252 = pneg %p119
        %s253 = sand.u32 %s109, 1
        %s254 = scalar_lea.sflag [#allocation4], %s253
        %s255 = sand.u32 %s109, 1
        %s256 = smul.addr %s255, 64
        %s257 = scalar_lea.vmem [#allocation3], %s256
        %v258 = vld [vmem:[%s237] sm:$0xf]
        %v259 = vld [vmem:[%s237 + $0x4] sm:$0xf]
        %v260 = vld [vmem:[%s237 + $0x8] sm:$0xf]
        %v261 = vld [vmem:[%s237 + $0xc] sm:$0xf]
        %v262 = vld [vmem:[%s237 + $0x10] sm:$0xf]
        %v263 = vld [vmem:[%s237 + $0x14] sm:$0xf]
        %v264 = vld [vmem:[%s237 + $0x18] sm:$0xf]
        %v265 = vld [vmem:[%s237 + $0x1c] sm:$0xf]
        %v266 = vunpack.c.l.bf16 %v258
        %v267 = vunpack.c.l.bf16 %v259
        %v268 = vunpack.c.l.bf16 %v260
        %v269 = vunpack.c.l.bf16 %v261
        %v270 = vunpack.c.l.bf16 %v262
        %v271 = vunpack.c.l.bf16 %v263
        %v272 = vunpack.c.l.bf16 %v264
        %v273 = vunpack.c.l.bf16 %v265
        %v274 = vld [vmem:[%s1] sm:$0x1]
        %v275 = vld [vmem:[%s1 + $0x1] sm:$0x1]
        %v276 = vld [vmem:[%s1 + $0x2] sm:$0x1]
        %v277 = vld [vmem:[%s1 + $0x3] sm:$0x1]
        %v278 = vld [vmem:[%s1 + $0x4] sm:$0x1]
        %v279 = vld [vmem:[%s1 + $0x5] sm:$0x1]
        %v280 = vld [vmem:[%s1 + $0x6] sm:$0x1]
        %v281 = vld [vmem:[%s1 + $0x7] sm:$0x1]
        %v290 = vperm.slane %v274, 0
        %v291 = vperm.slane %v275, 0
        %v292 = vperm.slane %v276, 0
        %v293 = vperm.slane %v277, 0
        %v294 = vperm.slane %v278, 0
        %v295 = vperm.slane %v279, 0
        %v296 = vperm.slane %v280, 0
        %v297 = vperm.slane %v281, 0
        %298 = vset.pattern.permute.xlu0 0
        %299 = vperm.xlu0 %298, %v290
        %v300 = vpop.permute.xlu0 %299
        %302 = vset.pattern.permute.xlu0 0
        %303 = vperm.xlu0 %302, %v291
        %v304 = vpop.permute.xlu0 %303
        %306 = vset.pattern.permute.xlu0 0
        %307 = vperm.xlu0 %306, %v292
        %v308 = vpop.permute.xlu0 %307
        %310 = vset.pattern.permute.xlu0 0
        %311 = vperm.xlu0 %310, %v293
        %v312 = vpop.permute.xlu0 %311
        %314 = vset.pattern.permute.xlu0 0
        %315 = vperm.xlu0 %314, %v294
        %v316 = vpop.permute.xlu0 %315
        %318 = vset.pattern.permute.xlu0 0
        %319 = vperm.xlu0 %318, %v295
        %v320 = vpop.permute.xlu0 %319
        %322 = vset.pattern.permute.xlu0 0
        %323 = vperm.xlu0 %322, %v296
        %v324 = vpop.permute.xlu0 %323
        %326 = vset.pattern.permute.xlu0 0
        %327 = vperm.xlu0 %326, %v297
        %v328 = vpop.permute.xlu0 %327
        %v330 = vmul.f32 %v266, %v300
        %v331 = vmul.f32 %v267, %v304
        %v332 = vmul.f32 %v268, %v308
        %v333 = vmul.f32 %v269, %v312
        %v334 = vmul.f32 %v270, %v316
        %v335 = vmul.f32 %v271, %v320
        %v336 = vmul.f32 %v272, %v324
        %v337 = vmul.f32 %v273, %v328
        %v338 = vld [vmem:[%s2] sm:$0x1]
        %v339 = vld [vmem:[%s2 + $0x1] sm:$0x1]
        %v340 = vld [vmem:[%s2 + $0x2] sm:$0x1]
        %v341 = vld [vmem:[%s2 + $0x3] sm:$0x1]
        %v342 = vld [vmem:[%s2 + $0x4] sm:$0x1]
        %v343 = vld [vmem:[%s2 + $0x5] sm:$0x1]
        %v344 = vld [vmem:[%s2 + $0x6] sm:$0x1]
        %v345 = vld [vmem:[%s2 + $0x7] sm:$0x1]
        %v354 = vperm.slane %v338, 0
        %v355 = vperm.slane %v339, 0
        %v356 = vperm.slane %v340, 0
        %v357 = vperm.slane %v341, 0
        %v358 = vperm.slane %v342, 0
        %v359 = vperm.slane %v343, 0
        %v360 = vperm.slane %v344, 0
        %v361 = vperm.slane %v345, 0
        %362 = vset.pattern.permute.xlu0 0
        %363 = vperm.xlu0 %362, %v354
        %v364 = vpop.permute.xlu0 %363
        %366 = vset.pattern.permute.xlu0 0
        %367 = vperm.xlu0 %366, %v355
        %v368 = vpop.permute.xlu0 %367
        %370 = vset.pattern.permute.xlu0 0
        %371 = vperm.xlu0 %370, %v356
        %v372 = vpop.permute.xlu0 %371
        %374 = vset.pattern.permute.xlu0 0
        %375 = vperm.xlu0 %374, %v357
        %v376 = vpop.permute.xlu0 %375
        %378 = vset.pattern.permute.xlu0 0
        %379 = vperm.xlu0 %378, %v358
        %v380 = vpop.permute.xlu0 %379
        %382 = vset.pattern.permute.xlu0 0
        %383 = vperm.xlu0 %382, %v359
        %v384 = vpop.permute.xlu0 %383
        %386 = vset.pattern.permute.xlu0 0
        %387 = vperm.xlu0 %386, %v360
        %v388 = vpop.permute.xlu0 %387
        %390 = vset.pattern.permute.xlu0 0
        %391 = vperm.xlu0 %390, %v361
        %v392 = vpop.permute.xlu0 %391
        %v394 = vadd.f32 %v330, %v364
        %v395 = vadd.f32 %v331, %v368
        %v396 = vadd.f32 %v332, %v372
        %v397 = vadd.f32 %v333, %v376
        %v398 = vadd.f32 %v334, %v380
        %v399 = vadd.f32 %v335, %v384
        %v400 = vadd.f32 %v336, %v388
        %v401 = vadd.f32 %v337, %v392
        %vm402 = vcmask 130048
        %403 = vst.msk [vmem:[%s257] sm:$0xff] %vm402, %v394
        %404 = vst.msk [vmem:[%s257 + $0x8] sm:$0xff] %vm402, %v395
        %405 = vst.msk [vmem:[%s257 + $0x10] sm:$0xff] %vm402, %v396
        %406 = vst.msk [vmem:[%s257 + $0x18] sm:$0xff] %vm402, %v397
        %407 = vst.msk [vmem:[%s257 + $0x20] sm:$0xff] %vm402, %v398
        %408 = vst.msk [vmem:[%s257 + $0x28] sm:$0xff] %vm402, %v399
        %409 = vst.msk [vmem:[%s257 + $0x30] sm:$0xff] %vm402, %v400
        %410 = vst.msk [vmem:[%s257 + $0x38] sm:$0xff] %vm402, %v401
        %s411 = sand.u32 %s109, 1
        %s412 = scalar_lea.sflag [#allocation4], %s411
        %s413 = sand.u32 %s109, 1
        %s414 = smul.addr %s413, 64
        %s415 = scalar_lea.vmem [#allocation3], %s414
        // Predicated region
        $region74: #{init_ffc_bn_act_forward.3} parent=68 // pred_check
          %p416 = pneg %p119
        $region75: #{init_ffc_bn_act_forward.3} parent=68 // pred_check_branch
          %418 = sbr.rel (%p416) target = $region77
        $region76: #{init_ffc_bn_act_forward.3} parent=68 // pred_region
          %420 = vsyncadd %s412, 0
          %s421 = smul.addr %s21, 16
          %s422 = sadd.s32 %s22, %s421
          %s423 = smul.addr %s422, 8
          %s424 = scalar_lea.hbm %s3, %s423
          %s425 = sshll.u32 %s415, 4
          %s426 = int_to_ptr.vmem [resolvable:$true] %s425
          %s427 = sshll.u32 %s424, 4
          %s428 = int_to_ptr.hbm [resolvable:$true] %s427
          %433 = dma.vmem_to_hbm [thread:$0]  %s426, 1024, %s428, %s412, 128, 256, 8
        $region77: #{init_ffc_bn_act_forward.3} parent=68 // pred_fallthru
          _
      $region69: #{init_ffc_bn_act_forward.3} parent=5 // pred_fallthru
        _
      %p434 = scmp.le.s32.totalorder 2, %s12
      // Predicated region
      $region78: #{init_ffc_bn_act_forward.3} parent=5 // pred_check
        %p435 = pneg %p434
      $region79: #{init_ffc_bn_act_forward.3} parent=5 // pred_check_branch
        %437 = sbr.rel (%p435) target = $region81
      $region80: #{init_ffc_bn_act_forward.3} parent=5 // pred_region
        %s438 = ssub.s32 %s12, 2
        // Predicated region
        $region82: #{init_ffc_bn_act_forward.3} parent=80 // pred_check
          %p439 = pneg %p125
        $region83: #{init_ffc_bn_act_forward.3} parent=80 // pred_check_branch
          %441 = sbr.rel (%p439) target = $region85
        $region84: #{init_ffc_bn_act_forward.3} parent=80 // pred_region
          %s442 = sand.u32 %s110, 1
          %s443 = scalar_lea.sflag [#allocation4], %s442
          %s444 = sand.u32 %s110, 1
          %s445 = smul.addr %s444, 64
          %s446 = scalar_lea.vmem [#allocation3], %s445
          %448 = dma.done %s443, 1024
        $region85: #{init_ffc_bn_act_forward.3} parent=80 // pred_fallthru
          _
      $region81: #{init_ffc_bn_act_forward.3} parent=5 // pred_fallthru
        _
    $region6: #{init_ffc_bn_act_forward.3} parent=1 // loop_footer
      %s16 = sadd.s32 1, %s12
    $region7: #{init_ffc_bn_act_forward.3} parent=1 // loop_footer_branch
      %11 = sbr.rel target = $region3
    $region8: #{init_ffc_bn_act_forward.3} parent=1 // loop_exit
      _
    %449 = vsyncpa [#allocation4], 1
    %s450 = scalar_lea.sflag [#allocation4], 1
    %451 = vsyncpa %s450, 1

// kernel: init_ffc_bn_act_forward.2
$region0: #{init_ffc_bn_act_forward.2}
  #allocation0 [shape = 'u32[]', space=smem, size = 0x4, offset = 0x4, fixed_abs, tag = 'smem constant byte address 0x4 - core index']
  #allocation1 [shape = 'u32[72,128]{1,0:T(1,128)}', space=vmem, size = 0x9000, scoped, tag = 'internal scratch']
  #allocation2 [shape = 'bf16[8,2048]{1,0:T(8,128)(2,1)}', space=vmem, size = 0x8000, scoped, tag = 'scratch operand']
  %s0 = inlined_call_operand.vmem [shape: bf16[2,8,3072], index: 0, kind: input, shape index: {}, may-alias: {0,1}]
  %s1 = inlined_call_operand.vmem [shape: bf16[2,8,3072], index: 1, kind: input, shape index: {}, may-alias: {0,1}]
  %s2 = inlined_call_operand.vmem [shape: bf16[9,8,8], index: 2, kind: input, shape index: {}]
  %s3 = inlined_call_operand.vmem [shape: f32[1,1024], index: 3, kind: input, shape index: {}]
  %s4 = inlined_call_operand.vmem [shape: bf16[2,8,2048], index: 4, kind: output, shape index: {0}]
  %s5 = inlined_call_operand.vmem [shape: f32[2,8,128], index: 5, kind: output, shape index: {1}]
  %s6 = inlined_call_operand.vmem [shape: f32[2,8,128], index: 6, kind: output, shape index: {2}]
  %7 = xla_tuple %s4, %s5, %s6
  %s8 = sld [smem:[#allocation0]]
  $region69: #{init_ffc_bn_act_forward.2} parent=0
    _
  %s10 = ssub.s32 1, %s8
  %s11 = scalar_select 0, %s10, %s8
  loop: start=0, step=1, limit=6
  $region2: #{init_ffc_bn_act_forward.2} parent=0 // loop_pre_header
    _
  $region3: #{init_ffc_bn_act_forward.2} parent=0 // loop_header
    %s13 = sphi 0, %s17
    %p14 = scmp.ge.s32.totalorder %s13, 6
    %s20 = sphi 0, %s32
    %s21 = sphi 0, %s28
    %s22 = sphi 0, %s20
    %s23 = sphi 0, %s21
    %s24 = sphi 0, %s22
    %s25 = sphi 0, %s23
    %s37 = sphi 0, %s39
    %s40 = sphi 0, %s37
    %s41 = sphi 0, %s40
    %s57 = sphi 0, %s41
    %s67 = sphi 0, %s69
    %s70 = sphi 0, %s67
    %s71 = sphi 0, %s70
    %s87 = sphi 0, %s71
    %s91 = sphi 0, %s91
    %s93 = sphi 0, %s91
    %s94 = sphi 0, %s93
    %s108 = sphi 0, %s94
    %s112 = sphi 0, %s112
    %s114 = sphi 0, %s112
    %s115 = sphi 0, %s114
    %s129 = sphi 0, %s115
    %s137 = sphi 0, %s139
    %s140 = sphi 0, %s137
    %s141 = sphi 0, %s140
    %s157 = sphi 0, %s141
    %s163 = sphi 0, %s165
    %s166 = sphi 0, %s163
    %s167 = sphi 0, %s166
    %s183 = sphi 0, %s167
    %s189 = sphi 0, %s191
    %s192 = sphi 0, %s189
    %s193 = sphi 0, %s192
    %s209 = sphi 0, %s193
  $region4: #{init_ffc_bn_act_forward.2} parent=0 // loop_header_branch
    %16 = sbr.rel (%p14) target = $region8
  $region5: #{init_ffc_bn_act_forward.2} parent=0 // loop_body
    %s18 = ssub.s32 %s13, 1
    %s19 = ssub.s32 %s13, 2
    %s26 = sadd.s32 1, %s21
    %p27 = scmp.ge.s32.totalorder %s26, 2
    %s28 = scalar_select %p27, 0, %s26
    %s29 = sadd.s32 1, %s20
    %s30 = scalar_select %p27, %s29, %s20
    %p31 = scmp.ge.s32.totalorder %s30, 2
    %s32 = scalar_select %p31, 0, %s30
    %s33 = ssub.s32 %s20, %s32
    %s34 = ssub.s32 %s21, %s28
    %s35 = sor.u32 %s33, %s34
    %p36 = scmp.eq.s32.totalorder %s35, 0
    %s38 = sadd.s32 %s37, 1
    %s39 = scalar_select %p36, %s37, %s38
    %p42 = pneg %p36
    %p43 = scmp.eq.s32.totalorder %s13, 3
    %p44 = por %p42, %p43
    %p45 = scmp.ne.s32.totalorder %s37, %s40
    %p46 = scmp.eq.s32.totalorder %s13, 0
    %p47 = por %p45, %p46
    %p48 = scmp.ne.s32.totalorder %s37, %s40
    %p49 = scmp.eq.s32.totalorder %s18, 3
    %p50 = por %p48, %p49
    %p51 = scmp.ne.s32.totalorder %s40, %s41
    %p52 = scmp.eq.s32.totalorder %s18, 0
    %p53 = por %p51, %p52
    %p54 = scmp.ne.s32.totalorder %s40, %s41
    %p55 = scmp.eq.s32.totalorder %s19, 3
    %p56 = por %p54, %p55
    %p58 = scmp.ne.s32.totalorder %s41, %s57
    %p59 = scmp.eq.s32.totalorder %s19, 0
    %p60 = por %p58, %p59
    %s61 = sadd.s32 %s21, 1
    %s62 = sadd.s32 %s28, 1
    %s63 = ssub.s32 %s20, %s32
    %s64 = ssub.s32 %s61, %s62
    %s65 = sor.u32 %s63, %s64
    %p66 = scmp.eq.s32.totalorder %s65, 0
    %s68 = sadd.s32 %s67, 1
    %s69 = scalar_select %p66, %s67, %s68
    %p72 = pneg %p66
    %p73 = scmp.eq.s32.totalorder %s13, 3
    %p74 = por %p72, %p73
    %p75 = scmp.ne.s32.totalorder %s67, %s70
    %p76 = scmp.eq.s32.totalorder %s13, 0
    %p77 = por %p75, %p76
    %p78 = scmp.ne.s32.totalorder %s67, %s70
    %p79 = scmp.eq.s32.totalorder %s18, 3
    %p80 = por %p78, %p79
    %p81 = scmp.ne.s32.totalorder %s70, %s71
    %p82 = scmp.eq.s32.totalorder %s18, 0
    %p83 = por %p81, %p82
    %p84 = scmp.ne.s32.totalorder %s70, %s71
    %p85 = scmp.eq.s32.totalorder %s19, 3
    %p86 = por %p84, %p85
    %p88 = scmp.ne.s32.totalorder %s71, %s87
    %p89 = scmp.eq.s32.totalorder %s19, 0
    %p90 = por %p88, %p89
    %s92 = sadd.s32 %s91, 1
    %p95 = scmp.eq.s32.totalorder %s13, 3
    %p96 = scmp.ne.s32.totalorder %s91, %s93
    %p97 = scmp.eq.s32.totalorder %s13, 0
    %p98 = por %p96, %p97
    %p99 = scmp.ne.s32.totalorder %s91, %s93
    %p100 = scmp.eq.s32.totalorder %s18, 3
    %p101 = por %p99, %p100
    %p102 = scmp.ne.s32.totalorder %s93, %s94
    %p103 = scmp.eq.s32.totalorder %s18, 0
    %p104 = por %p102, %p103
    %p105 = scmp.ne.s32.totalorder %s93, %s94
    %p106 = scmp.eq.s32.totalorder %s19, 3
    %p107 = por %p105, %p106
    %p109 = scmp.ne.s32.totalorder %s94, %s108
    %p110 = scmp.eq.s32.totalorder %s19, 0
    %p111 = por %p109, %p110
    %s113 = sadd.s32 %s112, 1
    %p116 = scmp.eq.s32.totalorder %s13, 3
    %p117 = scmp.ne.s32.totalorder %s112, %s114
    %p118 = scmp.eq.s32.totalorder %s13, 0
    %p119 = por %p117, %p118
    %p120 = scmp.ne.s32.totalorder %s112, %s114
    %p121 = scmp.eq.s32.totalorder %s18, 3
    %p122 = por %p120, %p121
    %p123 = scmp.ne.s32.totalorder %s114, %s115
    %p124 = scmp.eq.s32.totalorder %s18, 0
    %p125 = por %p123, %p124
    %p126 = scmp.ne.s32.totalorder %s114, %s115
    %p127 = scmp.eq.s32.totalorder %s19, 3
    %p128 = por %p126, %p127
    %p130 = scmp.ne.s32.totalorder %s115, %s129
    %p131 = scmp.eq.s32.totalorder %s19, 0
    %p132 = por %p130, %p131
    %s133 = ssub.s32 %s20, %s32
    %s134 = ssub.s32 %s21, %s28
    %s135 = sor.u32 %s133, %s134
    %p136 = scmp.eq.s32.totalorder %s135, 0
    %s138 = sadd.s32 %s137, 1
    %s139 = scalar_select %p136, %s137, %s138
    %p142 = pneg %p136
    %p143 = scmp.eq.s32.totalorder %s13, 3
    %p144 = por %p142, %p143
    %p145 = scmp.ne.s32.totalorder %s137, %s140
    %p146 = scmp.eq.s32.totalorder %s13, 0
    %p147 = por %p145, %p146
    %p148 = scmp.ne.s32.totalorder %s137, %s140
    %p149 = scmp.eq.s32.totalorder %s18, 3
    %p150 = por %p148, %p149
    %p151 = scmp.ne.s32.totalorder %s140, %s141
    %p152 = scmp.eq.s32.totalorder %s18, 0
    %p153 = por %p151, %p152
    %p154 = scmp.ne.s32.totalorder %s140, %s141
    %p155 = scmp.eq.s32.totalorder %s19, 3
    %p156 = por %p154, %p155
    %p158 = scmp.ne.s32.totalorder %s141, %s157
    %p159 = scmp.eq.s32.totalorder %s19, 0
    %p160 = por %p158, %p159
    %s161 = ssub.s32 %s20, %s32
    %p162 = scmp.eq.s32.totalorder %s161, 0
    %s164 = sadd.s32 %s163, 1
    %s165 = scalar_select %p162, %s163, %s164
    %p168 = pneg %p162
    %p169 = scmp.eq.s32.totalorder %s13, 3
    %p170 = por %p168, %p169
    %p171 = scmp.ne.s32.totalorder %s163, %s166
    %p172 = scmp.eq.s32.totalorder %s13, 0
    %p173 = por %p171, %p172
    %p174 = scmp.ne.s32.totalorder %s163, %s166
    %p175 = scmp.eq.s32.totalorder %s18, 3
    %p176 = por %p174, %p175
    %p177 = scmp.ne.s32.totalorder %s166, %s167
    %p178 = scmp.eq.s32.totalorder %s18, 0
    %p179 = por %p177, %p178
    %p180 = scmp.ne.s32.totalorder %s166, %s167
    %p181 = scmp.eq.s32.totalorder %s19, 3
    %p182 = por %p180, %p181
    %p184 = scmp.ne.s32.totalorder %s167, %s183
    %p185 = scmp.eq.s32.totalorder %s19, 0
    %p186 = por %p184, %p185
    %s187 = ssub.s32 %s20, %s32
    %p188 = scmp.eq.s32.totalorder %s187, 0
    %s190 = sadd.s32 %s189, 1
    %s191 = scalar_select %p188, %s189, %s190
    %p194 = pneg %p188
    %p195 = scmp.eq.s32.totalorder %s13, 3
    %p196 = por %p194, %p195
    %p197 = scmp.ne.s32.totalorder %s189, %s192
    %p198 = scmp.eq.s32.totalorder %s13, 0
    %p199 = por %p197, %p198
    %p200 = scmp.ne.s32.totalorder %s189, %s192
    %p201 = scmp.eq.s32.totalorder %s18, 3
    %p202 = por %p200, %p201
    %p203 = scmp.ne.s32.totalorder %s192, %s193
    %p204 = scmp.eq.s32.totalorder %s18, 0
    %p205 = por %p203, %p204
    %p206 = scmp.ne.s32.totalorder %s192, %s193
    %p207 = scmp.eq.s32.totalorder %s19, 3
    %p208 = por %p206, %p207
    %p210 = scmp.ne.s32.totalorder %s193, %s209
    %p211 = scmp.eq.s32.totalorder %s19, 0
    %p212 = por %p210, %p211
    %p213 = scmp.le.s32.totalorder 1, %s13
    %p214 = scmp.lt.s32.totalorder %s13, 5
    %p215 = pnand %p213, %p214
    %p216 = pneg %p215
    // Predicated region
    $region9: #{init_ffc_bn_act_forward.2} parent=5 // pred_check
      _
    $region10: #{init_ffc_bn_act_forward.2} parent=5 // pred_check_branch
      %218 = sbr.rel (%p215) target = $region12
    $region11: #{init_ffc_bn_act_forward.2} parent=5 // pred_region
      %s219 = ssub.s32 %s13, 1
      // Predicated region
      $region13: #{init_ffc_bn_act_forward.2} parent=11 // pred_check
        %p220 = pneg %p104
      $region14: #{init_ffc_bn_act_forward.2} parent=11 // pred_check_branch
        %222 = sbr.rel (%p220) target = $region16
      $region15: #{init_ffc_bn_act_forward.2} parent=11 // pred_region
        _
      $region16: #{init_ffc_bn_act_forward.2} parent=11 // pred_fallthru
        _
      // Predicated region
      $region17: #{init_ffc_bn_act_forward.2} parent=11 // pred_check
        %p223 = pneg %p125
      $region18: #{init_ffc_bn_act_forward.2} parent=11 // pred_check_branch
        %225 = sbr.rel (%p223) target = $region20
      $region19: #{init_ffc_bn_act_forward.2} parent=11 // pred_region
        _
      $region20: #{init_ffc_bn_act_forward.2} parent=11 // pred_fallthru
        _
    $region12: #{init_ffc_bn_act_forward.2} parent=5 // pred_fallthru
      _
    %p226 = scmp.lt.s32.totalorder %s13, 4
    // Predicated region
    $region21: #{init_ffc_bn_act_forward.2} parent=5 // pred_check
      %p227 = pneg %p226
    $region22: #{init_ffc_bn_act_forward.2} parent=5 // pred_check_branch
      %229 = sbr.rel (%p227) target = $region24
    $region23: #{init_ffc_bn_act_forward.2} parent=5 // pred_region
      // Predicated region
      $region25: #{init_ffc_bn_act_forward.2} parent=23 // pred_check
        %p230 = pneg %p47
      $region26: #{init_ffc_bn_act_forward.2} parent=23 // pred_check_branch
        %232 = sbr.rel (%p230) target = $region28
      $region27: #{init_ffc_bn_act_forward.2} parent=23 // pred_region
        %s233 = smul.u32 8, %s21
        %p234 = scmp.lt.s32.totalorder %s20, 1
        %s235 = scalar_select %p234, %s20, 1
        %p236 = scmp.lt.s32.totalorder %s233, 23
        %s237 = scalar_select %p236, %s233, 23
        %s238 = smul.addr %s235, 24
        %s239 = sadd.s32 %s237, %s238
        %s240 = smul.addr %s239, 4
        %s241 = scalar_lea.vmem %s0, %s240
        %s242 = smul.u32 8, %s21
      $region28: #{init_ffc_bn_act_forward.2} parent=23 // pred_fallthru
        _
      // Predicated region
      $region29: #{init_ffc_bn_act_forward.2} parent=23 // pred_check
        %p243 = pneg %p77
      $region30: #{init_ffc_bn_act_forward.2} parent=23 // pred_check_branch
        %245 = sbr.rel (%p243) target = $region32
      $region31: #{init_ffc_bn_act_forward.2} parent=23 // pred_region
        %s246 = sadd.s32 %s21, 1
        %s247 = smul.u32 8, %s246
        %p248 = scmp.lt.s32.totalorder %s20, 1
        %s249 = scalar_select %p248, %s20, 1
        %p250 = scmp.lt.s32.totalorder %s247, 23
        %s251 = scalar_select %p250, %s247, 23
        %s252 = smul.addr %s249, 24
        %s253 = sadd.s32 %s251, %s252
        %s254 = smul.addr %s253, 4
        %s255 = scalar_lea.vmem %s1, %s254
        %s256 = sadd.s32 %s21, 1
        %s257 = smul.u32 8, %s256
      $region32: #{init_ffc_bn_act_forward.2} parent=23 // pred_fallthru
        _
    $region24: #{init_ffc_bn_act_forward.2} parent=5 // pred_fallthru
      _
    %p258 = scmp.le.s32.totalorder 1, %s13
    %p259 = scmp.lt.s32.totalorder %s13, 5
    %p260 = pnand %p258, %p259
    %p261 = pneg %p260
    // Predicated region
    $region33: #{init_ffc_bn_act_forward.2} parent=5 // pred_check
      _
    $region34: #{init_ffc_bn_act_forward.2} parent=5 // pred_check_branch
      %263 = sbr.rel (%p260) target = $region36
    $region35: #{init_ffc_bn_act_forward.2} parent=5 // pred_region
      %s264 = ssub.s32 %s13, 1
      %s265 = smul.u32 8, %s23
      %p266 = scmp.lt.s32.totalorder %s22, 1
      %s267 = scalar_select %p266, %s22, 1
      %p268 = scmp.lt.s32.totalorder %s265, 23
      %s269 = scalar_select %p268, %s265, 23
      %s270 = smul.addr %s267, 24
      %s271 = sadd.s32 %s269, %s270
      %s272 = smul.addr %s271, 4
      %s273 = scalar_lea.vmem %s0, %s272
      %p274 = pneg %p53
      %p275 = pneg %p50
      %s276 = sadd.s32 %s23, 1
      %s277 = smul.u32 8, %s276
      %p278 = scmp.lt.s32.totalorder %s22, 1
      %s279 = scalar_select %p278, %s22, 1
      %p280 = scmp.lt.s32.totalorder %s277, 23
      %s281 = scalar_select %p280, %s277, 23
      %s282 = smul.addr %s279, 24
      %s283 = sadd.s32 %s281, %s282
      %s284 = smul.addr %s283, 4
      %s285 = scalar_lea.vmem %s1, %s284
      %p286 = pneg %p83
      %p287 = pneg %p80
      %p288 = pneg %p104
      %p289 = pneg %p101
      %p290 = pneg %p125
      %p291 = pneg %p122
      %p292 = pneg %p153
      %p293 = pneg %p150
      %s294 = smul.u32 8, %s23
      %p295 = scmp.lt.s32.totalorder %s22, 1
      %s296 = scalar_select %p295, %s22, 1
      %p297 = scmp.lt.s32.totalorder %s294, 15
      %s298 = scalar_select %p297, %s294, 15
      %s299 = smul.addr %s296, 16
      %s300 = sadd.s32 %s298, %s299
      %s301 = smul.addr %s300, 4
      %s302 = scalar_lea.vmem %s4, %s301
      %p303 = pneg %p179
      %p304 = pneg %p176
      %p305 = scmp.lt.s32.totalorder %s22, 1
      %s306 = scalar_select %p305, %s22, 1
      %s307 = smul.addr %s306, 8
      %s308 = scalar_lea.vmem %s5, %s307
      %p309 = pneg %p205
      %p310 = pneg %p202
      %p311 = scmp.lt.s32.totalorder %s22, 1
      %s312 = scalar_select %p311, %s22, 1
      %s313 = smul.addr %s312, 8
      %s314 = scalar_lea.vmem %s6, %s313
      %s315 = smul.u32 8, %s23
      %p316 = scmp.lt.s32.totalorder %s22, 1
      %s317 = scalar_select %p316, %s22, 1
      %p318 = scmp.lt.s32.totalorder %s315, 23
      %s319 = scalar_select %p318, %s315, 23
      %s320 = smul.addr %s317, 24
      %s321 = sadd.s32 %s319, %s320
      %s322 = smul.addr %s321, 4
      %s323 = scalar_lea.vmem %s0, %s322
      %s324 = smul.u32 8, %s23
      %s325 = sadd.s32 %s23, 1
      %s326 = smul.u32 8, %s325
      %p327 = scmp.lt.s32.totalorder %s22, 1
      %s328 = scalar_select %p327, %s22, 1
      %p329 = scmp.lt.s32.totalorder %s326, 23
      %s330 = scalar_select %p329, %s326, 23
      %s331 = smul.addr %s328, 24
      %s332 = sadd.s32 %s330, %s331
      %s333 = smul.addr %s332, 4
      %s334 = scalar_lea.vmem %s1, %s333
      %s335 = sadd.s32 %s23, 1
      %s336 = smul.u32 8, %s335
      %s337 = smul.u32 8, %s23
      %p338 = scmp.lt.s32.totalorder %s22, 1
      %s339 = scalar_select %p338, %s22, 1
      %p340 = scmp.lt.s32.totalorder %s337, 15
      %s341 = scalar_select %p340, %s337, 15
      %s342 = smul.addr %s339, 16
      %s343 = sadd.s32 %s341, %s342
      %s344 = smul.addr %s343, 4
      %s345 = scalar_lea.vmem %s4, %s344
      %s346 = smul.u32 8, %s23
      %p347 = scmp.lt.s32.totalorder %s22, 1
      %s348 = scalar_select %p347, %s22, 1
      %s349 = smul.addr %s348, 8
      %s350 = scalar_lea.vmem %s5, %s349
      %p351 = scmp.lt.s32.totalorder %s22, 1
      %s352 = scalar_select %p351, %s22, 1
      %s353 = smul.addr %s352, 8
      %s354 = scalar_lea.vmem %s6, %s353
      %p356 = scmp.eq.s32.totalorder %s23, 0
      // Predicated region
      $region37: #{init_ffc_bn_act_forward.2} parent=35 // pred_check
        %p357 = pneg %p356
      $region38: #{init_ffc_bn_act_forward.2} parent=35 // pred_check_branch
        %359 = sbr.rel (%p357) target = $region40
      $region39: #{init_ffc_bn_act_forward.2} parent=35 // pred_region
        %360 = vst [vmem:[%s350] sm:$0xff] 0.0
        %361 = vst [vmem:[%s354] sm:$0xff] 0.0
      $region40: #{init_ffc_bn_act_forward.2} parent=35 // pred_fallthru
        _
      %v362 = vld [vmem:[%s323] sm:$0xff]
      %v363 = vld [vmem:[%s323 + $0x8] sm:$0xff]
      %v364 = vld [vmem:[%s323 + $0x10] sm:$0xff]
      %v365 = vld [vmem:[%s323 + $0x18] sm:$0xff]
      %366 = vst [vmem:[#allocation2] sm:$0xff] %v362
      %367 = vst [vmem:[#allocation2 + $0x8] sm:$0xff] %v363
      %368 = vst [vmem:[#allocation2 + $0x10] sm:$0xff] %v364
      %369 = vst [vmem:[#allocation2 + $0x18] sm:$0xff] %v365
      %v370 = vld [vmem:[%s334] sm:$0xff]
      %v371 = vld [vmem:[%s334 + $0x8] sm:$0xff]
      %v372 = vld [vmem:[%s334 + $0x10] sm:$0xff]
      %v373 = vld [vmem:[%s334 + $0x18] sm:$0xff]
      %374 = vst [vmem:[#allocation2 + $0x20] sm:$0xff] %v370
      %375 = vst [vmem:[#allocation2 + $0x28] sm:$0xff] %v371
      %376 = vst [vmem:[#allocation2 + $0x30] sm:$0xff] %v372
      %377 = vst [vmem:[#allocation2 + $0x38] sm:$0xff] %v373
      %v378 = vld [vmem:[#allocation2] sm:$0xff]
      %v379 = vld [vmem:[#allocation2 + $0x8] sm:$0xff]
      %v380 = vld [vmem:[#allocation2 + $0x10] sm:$0xff]
      %v381 = vld [vmem:[#allocation2 + $0x18] sm:$0xff]
      %v382 = vld [vmem:[%s2] sm:$0xf]
      %v383 = vld [vmem:[#allocation2 + $0x20] sm:$0xf]
      %s384 = scalar_lea.vmem %s2, 4
      %v385 = vld [vmem:[%s384] sm:$0xf]
      %v391 = vunpack.c.l.b16 %v378
      %v392 = vunpack.c.h.b16 %v378
      %v393 = vunpack.c.l.b16 %v379
      %v394 = vunpack.c.h.b16 %v379
      %v395 = vunpack.c.l.b16 %v380
      %v396 = vunpack.c.h.b16 %v380
      %v397 = vunpack.c.l.b16 %v381
      %v398 = vunpack.c.h.b16 %v381
      %v399 = vunpack.c.l.b16 %v383
      %v400 = vpack.c.b16 %v391, %v391
      %v401 = vpack.c.b16 %v392, %v392
      %v402 = vpack.c.b16 %v393, %v393
      %v403 = vpack.c.b16 %v394, %v394
      %v404 = vpack.c.b16 %v395, %v395
      %v405 = vpack.c.b16 %v396, %v396
      %v406 = vpack.c.b16 %v397, %v397
      %v407 = vpack.c.b16 %v398, %v398
      %v408 = vpack.c.b16 %v399, %v399
      %409 = vrot.lane.b32.xlu0 %v400, 127
      %v410 = vpop.permute.xlu0 %409
      %411 = vrot.lane.b32.xlu0 %v401, 127
      %v412 = vpop.permute.xlu0 %411
      %413 = vrot.lane.b32.xlu0 %v402, 127
      %v414 = vpop.permute.xlu0 %413
      %415 = vrot.lane.b32.xlu0 %v403, 127
      %v416 = vpop.permute.xlu0 %415
      %417 = vrot.lane.b32.xlu0 %v404, 127
      %v418 = vpop.permute.xlu0 %417
      %419 = vrot.lane.b32.xlu0 %v405, 127
      %v420 = vpop.permute.xlu0 %419
      %421 = vrot.lane.b32.xlu0 %v406, 127
      %v422 = vpop.permute.xlu0 %421
      %423 = vrot.lane.b32.xlu0 %v407, 127
      %v424 = vpop.permute.xlu0 %423
      %425 = vrot.lane.b32.xlu0 %v408, 127
      %v426 = vpop.permute.xlu0 %425
      %vm427 = vcmask 1039360
      %v428 = vsel %vm427, %v410, %v412
      %v429 = vsel %vm427, %v412, %v414
      %v430 = vsel %vm427, %v414, %v416
      %v431 = vsel %vm427, %v416, %v418
      %v432 = vsel %vm427, %v418, %v420
      %v433 = vsel %vm427, %v420, %v422
      %v434 = vsel %vm427, %v422, %v424
      %v435 = vsel %vm427, %v424, %v426
      %vm436 = vcmask 64512
      %v438 = vsel %vm436, %v385, 0
      %vm440 = vcmask 1043456
      %v442 = vsel %vm440, %v428, 0
      %v445 = vsel %vm440, %v429, 0
      %v448 = vsel %vm440, %v430, 0
      %v451 = vsel %vm440, %v431, 0
      %v454 = vsel %vm440, %v432, 0
      %v457 = vsel %vm440, %v433, 0
      %v460 = vsel %vm440, %v434, 0
      %v463 = vsel %vm440, %v435, 0
      %465 = vmatpush.bf16.msra.mxu0 0
      %466 = vmatpush.bf16.msra.mxu0 0
      %467 = vmatpush.bf16.msra.mxu0 0
      %468 = vmatpush.bf16.msra.mxu0 0
      %469 = vmatpush.bf16.msra.mxu0 0
      %470 = vmatpush.bf16.msra.mxu0 0
      %471 = vmatpush.bf16.msra.mxu0 0
      %472 = vmatpush.bf16.msra.mxu0 %v442
      %473 = vmatmul.bf16.gmra.mxu0 %v438
      %v474 = vpop.f32.mrf.mxu0
      %v475 = vadd.f32 0.0, %v474
      %v476 = vpop.f32.mrf.mxu0
      %477 = vdwg.mxu0
      %478 = vmatpush.bf16.msra.mxu0 0
      %479 = vmatpush.bf16.msra.mxu0 0
      %480 = vmatpush.bf16.msra.mxu0 0
      %481 = vmatpush.bf16.msra.mxu0 0
      %482 = vmatpush.bf16.msra.mxu0 0
      %483 = vmatpush.bf16.msra.mxu0 0
      %484 = vmatpush.bf16.msra.mxu0 0
      %485 = vmatpush.bf16.msra.mxu0 %v445
      %486 = vmatmul.bf16.gmra.mxu0 %v438
      %v487 = vpop.f32.mrf.mxu0
      %v488 = vadd.f32 0.0, %v487
      %v489 = vpop.f32.mrf.mxu0
      %490 = vdwg.mxu0
      %491 = vmatpush.bf16.msra.mxu0 0
      %492 = vmatpush.bf16.msra.mxu0 0
      %493 = vmatpush.bf16.msra.mxu0 0
      %494 = vmatpush.bf16.msra.mxu0 0
      %495 = vmatpush.bf16.msra.mxu0 0
      %496 = vmatpush.bf16.msra.mxu0 0
      %497 = vmatpush.bf16.msra.mxu0 0
      %498 = vmatpush.bf16.msra.mxu0 %v448
      %499 = vmatmul.bf16.gmra.mxu0 %v438
      %v500 = vpop.f32.mrf.mxu0
      %v501 = vadd.f32 0.0, %v500
      %v502 = vpop.f32.mrf.mxu0
      %503 = vdwg.mxu0
      %504 = vmatpush.bf16.msra.mxu0 0
      %505 = vmatpush.bf16.msra.mxu0 0
      %506 = vmatpush.bf16.msra.mxu0 0
      %507 = vmatpush.bf16.msra.mxu0 0
      %508 = vmatpush.bf16.msra.mxu0 0
      %509 = vmatpush.bf16.msra.mxu0 0
      %510 = vmatpush.bf16.msra.mxu0 0
      %511 = vmatpush.bf16.msra.mxu0 %v451
      %512 = vmatmul.bf16.gmra.mxu0 %v438
      %v513 = vpop.f32.mrf.mxu0
      %v514 = vadd.f32 0.0, %v513
      %v515 = vpop.f32.mrf.mxu0
      %516 = vdwg.mxu0
      %517 = vmatpush.bf16.msra.mxu0 0
      %518 = vmatpush.bf16.msra.mxu0 0
      %519 = vmatpush.bf16.msra.mxu0 0
      %520 = vmatpush.bf16.msra.mxu0 0
      %521 = vmatpush.bf16.msra.mxu0 0
      %522 = vmatpush.bf16.msra.mxu0 0
      %523 = vmatpush.bf16.msra.mxu0 0
      %524 = vmatpush.bf16.msra.mxu0 %v454
      %525 = vmatmul.bf16.gmra.mxu0 %v438
      %v526 = vpop.f32.mrf.mxu0
      %v527 = vadd.f32 0.0, %v526
      %v528 = vpop.f32.mrf.mxu0
      %529 = vdwg.mxu0
      %530 = vmatpush.bf16.msra.mxu0 0
      %531 = vmatpush.bf16.msra.mxu0 0
      %532 = vmatpush.bf16.msra.mxu0 0
      %533 = vmatpush.bf16.msra.mxu0 0
      %534 = vmatpush.bf16.msra.mxu0 0
      %535 = vmatpush.bf16.msra.mxu0 0
      %536 = vmatpush.bf16.msra.mxu0 0
      %537 = vmatpush.bf16.msra.mxu0 %v457
      %538 = vmatmul.bf16.gmra.mxu0 %v438
      %v539 = vpop.f32.mrf.mxu0
      %v540 = vadd.f32 0.0, %v539
      %v541 = vpop.f32.mrf.mxu0
      %542 = vdwg.mxu0
      %543 = vmatpush.bf16.msra.mxu0 0
      %544 = vmatpush.bf16.msra.mxu0 0
      %545 = vmatpush.bf16.msra.mxu0 0
      %546 = vmatpush.bf16.msra.mxu0 0
      %547 = vmatpush.bf16.msra.mxu0 0
      %548 = vmatpush.bf16.msra.mxu0 0
      %549 = vmatpush.bf16.msra.mxu0 0
      %550 = vmatpush.bf16.msra.mxu0 %v460
      %551 = vmatmul.bf16.gmra.mxu0 %v438
      %v552 = vpop.f32.mrf.mxu0
      %v553 = vadd.f32 0.0, %v552
      %v554 = vpop.f32.mrf.mxu0
      %555 = vdwg.mxu0
      %556 = vmatpush.bf16.msra.mxu0 0
      %557 = vmatpush.bf16.msra.mxu0 0
      %558 = vmatpush.bf16.msra.mxu0 0
      %559 = vmatpush.bf16.msra.mxu0 0
      %560 = vmatpush.bf16.msra.mxu0 0
      %561 = vmatpush.bf16.msra.mxu0 0
      %562 = vmatpush.bf16.msra.mxu0 0
      %563 = vmatpush.bf16.msra.mxu0 %v463
      %564 = vmatmul.bf16.gmra.mxu0 %v438
      %v565 = vpop.f32.mrf.mxu0
      %v566 = vadd.f32 0.0, %v565
      %v567 = vpop.f32.mrf.mxu0
      %568 = vdwg.mxu0
      %v570 = vsel %vm436, %v382, 0
      %v573 = vsel %vm440, %v400, 0
      %v576 = vsel %vm440, %v401, 0
      %v579 = vsel %vm440, %v402, 0
      %v582 = vsel %vm440, %v403, 0
      %v585 = vsel %vm440, %v404, 0
      %v588 = vsel %vm440, %v405, 0
      %v591 = vsel %vm440, %v406, 0
      %v594 = vsel %vm440, %v407, 0
      %596 = vmatpush.bf16.msra.mxu0 0
      %597 = vmatpush.bf16.msra.mxu0 0
      %598 = vmatpush.bf16.msra.mxu0 0
      %599 = vmatpush.bf16.msra.mxu0 0
      %600 = vmatpush.bf16.msra.mxu0 0
      %601 = vmatpush.bf16.msra.mxu0 0
      %602 = vmatpush.bf16.msra.mxu0 0
      %603 = vmatpush.bf16.msra.mxu0 %v573
      %604 = vmatmul.bf16.gmra.mxu0 %v570
      %v605 = vpop.f32.mrf.mxu0
      %v606 = vadd.f32 %v475, %v605
      %v607 = vpop.f32.mrf.mxu0
      %608 = vdwg.mxu0
      %609 = vmatpush.bf16.msra.mxu0 0
      %610 = vmatpush.bf16.msra.mxu0 0
      %611 = vmatpush.bf16.msra.mxu0 0
      %612 = vmatpush.bf16.msra.mxu0 0
      %613 = vmatpush.bf16.msra.mxu0 0
      %614 = vmatpush.bf16.msra.mxu0 0
      %615 = vmatpush.bf16.msra.mxu0 0
      %616 = vmatpush.bf16.msra.mxu0 %v576
      %617 = vmatmul.bf16.gmra.mxu0 %v570
      %v618 = vpop.f32.mrf.mxu0
      %v619 = vadd.f32 %v488, %v618
      %v620 = vpop.f32.mrf.mxu0
      %621 = vdwg.mxu0
      %622 = vmatpush.bf16.msra.mxu0 0
      %623 = vmatpush.bf16.msra.mxu0 0
      %624 = vmatpush.bf16.msra.mxu0 0
      %625 = vmatpush.bf16.msra.mxu0 0
      %626 = vmatpush.bf16.msra.mxu0 0
      %627 = vmatpush.bf16.msra.mxu0 0
      %628 = vmatpush.bf16.msra.mxu0 0
      %629 = vmatpush.bf16.msra.mxu0 %v579
      %630 = vmatmul.bf16.gmra.mxu0 %v570
      %v631 = vpop.f32.mrf.mxu0
      %v632 = vadd.f32 %v501, %v631
      %v633 = vpop.f32.mrf.mxu0
      %634 = vdwg.mxu0
      %635 = vmatpush.bf16.msra.mxu0 0
      %636 = vmatpush.bf16.msra.mxu0 0
      %637 = vmatpush.bf16.msra.mxu0 0
      %638 = vmatpush.bf16.msra.mxu0 0
      %639 = vmatpush.bf16.msra.mxu0 0
      %640 = vmatpush.bf16.msra.mxu0 0
      %641 = vmatpush.bf16.msra.mxu0 0
      %642 = vmatpush.bf16.msra.mxu0 %v582
      %643 = vmatmul.bf16.gmra.mxu0 %v570
      %v644 = vpop.f32.mrf.mxu0
      %v645 = vadd.f32 %v514, %v644
      %v646 = vpop.f32.mrf.mxu0
      %647 = vdwg.mxu0
      %648 = vmatpush.bf16.msra.mxu0 0
      %649 = vmatpush.bf16.msra.mxu0 0
      %650 = vmatpush.bf16.msra.mxu0 0
      %651 = vmatpush.bf16.msra.mxu0 0
      %652 = vmatpush.bf16.msra.mxu0 0
      %653 = vmatpush.bf16.msra.mxu0 0
      %654 = vmatpush.bf16.msra.mxu0 0
      %655 = vmatpush.bf16.msra.mxu0 %v585
      %656 = vmatmul.bf16.gmra.mxu0 %v570
      %v657 = vpop.f32.mrf.mxu0
      %v658 = vadd.f32 %v527, %v657
      %v659 = vpop.f32.mrf.mxu0
      %660 = vdwg.mxu0
      %661 = vmatpush.bf16.msra.mxu0 0
      %662 = vmatpush.bf16.msra.mxu0 0
      %663 = vmatpush.bf16.msra.mxu0 0
      %664 = vmatpush.bf16.msra.mxu0 0
      %665 = vmatpush.bf16.msra.mxu0 0
      %666 = vmatpush.bf16.msra.mxu0 0
      %667 = vmatpush.bf16.msra.mxu0 0
      %668 = vmatpush.bf16.msra.mxu0 %v588
      %669 = vmatmul.bf16.gmra.mxu0 %v570
      %v670 = vpop.f32.mrf.mxu0
      %v671 = vadd.f32 %v540, %v670
      %v672 = vpop.f32.mrf.mxu0
      %673 = vdwg.mxu0
      %674 = vmatpush.bf16.msra.mxu0 0
      %675 = vmatpush.bf16.msra.mxu0 0
      %676 = vmatpush.bf16.msra.mxu0 0
      %677 = vmatpush.bf16.msra.mxu0 0
      %678 = vmatpush.bf16.msra.mxu0 0
      %679 = vmatpush.bf16.msra.mxu0 0
      %680 = vmatpush.bf16.msra.mxu0 0
      %681 = vmatpush.bf16.msra.mxu0 %v591
      %682 = vmatmul.bf16.gmra.mxu0 %v570
      %v683 = vpop.f32.mrf.mxu0
      %v684 = vadd.f32 %v553, %v683
      %v685 = vpop.f32.mrf.mxu0
      %686 = vdwg.mxu0
      %687 = vmatpush.bf16.msra.mxu0 0
      %688 = vmatpush.bf16.msra.mxu0 0
      %689 = vmatpush.bf16.msra.mxu0 0
      %690 = vmatpush.bf16.msra.mxu0 0
      %691 = vmatpush.bf16.msra.mxu0 0
      %692 = vmatpush.bf16.msra.mxu0 0
      %693 = vmatpush.bf16.msra.mxu0 0
      %694 = vmatpush.bf16.msra.mxu0 %v594
      %695 = vmatmul.bf16.gmra.mxu0 %v570
      %v696 = vpop.f32.mrf.mxu0
      %v697 = vadd.f32 %v566, %v696
      %v698 = vpop.f32.mrf.mxu0
      %699 = vdwg.mxu0
      %s700 = scalar_lea.vmem %s2, 8
      %v701 = vld [vmem:[%s700] sm:$0xf]
      %702 = vrot.lane.b32.xlu0 %v400, 126
      %v703 = vpop.permute.xlu0 %702
      %704 = vrot.lane.b32.xlu0 %v401, 126
      %v705 = vpop.permute.xlu0 %704
      %706 = vrot.lane.b32.xlu0 %v402, 126
      %v707 = vpop.permute.xlu0 %706
      %708 = vrot.lane.b32.xlu0 %v403, 126
      %v709 = vpop.permute.xlu0 %708
      %710 = vrot.lane.b32.xlu0 %v404, 126
      %v711 = vpop.permute.xlu0 %710
      %712 = vrot.lane.b32.xlu0 %v405, 126
      %v713 = vpop.permute.xlu0 %712
      %714 = vrot.lane.b32.xlu0 %v406, 126
      %v715 = vpop.permute.xlu0 %714
      %716 = vrot.lane.b32.xlu0 %v407, 126
      %v717 = vpop.permute.xlu0 %716
      %718 = vrot.lane.b32.xlu0 %v408, 126
      %v719 = vpop.permute.xlu0 %718
      %vm720 = vcmask 1031168
      %v721 = vsel %vm720, %v703, %v705
      %v722 = vsel %vm720, %v705, %v707
      %v723 = vsel %vm720, %v707, %v709
      %v724 = vsel %vm720, %v709, %v711
      %v725 = vsel %vm720, %v711, %v713
      %v726 = vsel %vm720, %v713, %v715
      %v727 = vsel %vm720, %v715, %v717
      %v728 = vsel %vm720, %v717, %v719
      %v730 = vsel %vm436, %v701, 0
      %v733 = vsel %vm440, %v721, 0
      %v736 = vsel %vm440, %v722, 0
      %v739 = vsel %vm440, %v723, 0
      %v742 = vsel %vm440, %v724, 0
      %v745 = vsel %vm440, %v725, 0
      %v748 = vsel %vm440, %v726, 0
      %v751 = vsel %vm440, %v727, 0
      %v754 = vsel %vm440, %v728, 0
      %756 = vmatpush.bf16.msra.mxu0 0
      %757 = vmatpush.bf16.msra.mxu0 0
      %758 = vmatpush.bf16.msra.mxu0 0
      %759 = vmatpush.bf16.msra.mxu0 0
      %760 = vmatpush.bf16.msra.mxu0 0
      %761 = vmatpush.bf16.msra.mxu0 0
      %762 = vmatpush.bf16.msra.mxu0 0
      %763 = vmatpush.bf16.msra.mxu0 %v733
      %764 = vmatmul.bf16.gmra.mxu0 %v730
      %v765 = vpop.f32.mrf.mxu0
      %v766 = vadd.f32 0.0, %v765
      %v767 = vpop.f32.mrf.mxu0
      %768 = vdwg.mxu0
      %769 = vmatpush.bf16.msra.mxu0 0
      %770 = vmatpush.bf16.msra.mxu0 0
      %771 = vmatpush.bf16.msra.mxu0 0
      %772 = vmatpush.bf16.msra.mxu0 0
      %773 = vmatpush.bf16.msra.mxu0 0
      %774 = vmatpush.bf16.msra.mxu0 0
      %775 = vmatpush.bf16.msra.mxu0 0
      %776 = vmatpush.bf16.msra.mxu0 %v736
      %777 = vmatmul.bf16.gmra.mxu0 %v730
      %v778 = vpop.f32.mrf.mxu0
      %v779 = vadd.f32 0.0, %v778
      %v780 = vpop.f32.mrf.mxu0
      %781 = vdwg.mxu0
      %782 = vmatpush.bf16.msra.mxu0 0
      %783 = vmatpush.bf16.msra.mxu0 0
      %784 = vmatpush.bf16.msra.mxu0 0
      %785 = vmatpush.bf16.msra.mxu0 0
      %786 = vmatpush.bf16.msra.mxu0 0
      %787 = vmatpush.bf16.msra.mxu0 0
      %788 = vmatpush.bf16.msra.mxu0 0
      %789 = vmatpush.bf16.msra.mxu0 %v739
      %790 = vmatmul.bf16.gmra.mxu0 %v730
      %v791 = vpop.f32.mrf.mxu0
      %v792 = vadd.f32 0.0, %v791
      %v793 = vpop.f32.mrf.mxu0
      %794 = vdwg.mxu0
      %795 = vmatpush.bf16.msra.mxu0 0
      %796 = vmatpush.bf16.msra.mxu0 0
      %797 = vmatpush.bf16.msra.mxu0 0
      %798 = vmatpush.bf16.msra.mxu0 0
      %799 = vmatpush.bf16.msra.mxu0 0
      %800 = vmatpush.bf16.msra.mxu0 0
      %801 = vmatpush.bf16.msra.mxu0 0
      %802 = vmatpush.bf16.msra.mxu0 %v742
      %803 = vmatmul.bf16.gmra.mxu0 %v730
      %v804 = vpop.f32.mrf.mxu0
      %v805 = vadd.f32 0.0, %v804
      %v806 = vpop.f32.mrf.mxu0
      %807 = vdwg.mxu0
      %808 = vmatpush.bf16.msra.mxu0 0
      %809 = vmatpush.bf16.msra.mxu0 0
      %810 = vmatpush.bf16.msra.mxu0 0
      %811 = vmatpush.bf16.msra.mxu0 0
      %812 = vmatpush.bf16.msra.mxu0 0
      %813 = vmatpush.bf16.msra.mxu0 0
      %814 = vmatpush.bf16.msra.mxu0 0
      %815 = vmatpush.bf16.msra.mxu0 %v745
      %816 = vmatmul.bf16.gmra.mxu0 %v730
      %v817 = vpop.f32.mrf.mxu0
      %v818 = vadd.f32 0.0, %v817
      %v819 = vpop.f32.mrf.mxu0
      %820 = vdwg.mxu0
      %821 = vmatpush.bf16.msra.mxu0 0
      %822 = vmatpush.bf16.msra.mxu0 0
      %823 = vmatpush.bf16.msra.mxu0 0
      %824 = vmatpush.bf16.msra.mxu0 0
      %825 = vmatpush.bf16.msra.mxu0 0
      %826 = vmatpush.bf16.msra.mxu0 0
      %827 = vmatpush.bf16.msra.mxu0 0
      %828 = vmatpush.bf16.msra.mxu0 %v748
      %829 = vmatmul.bf16.gmra.mxu0 %v730
      %v830 = vpop.f32.mrf.mxu0
      %v831 = vadd.f32 0.0, %v830
      %v832 = vpop.f32.mrf.mxu0
      %833 = vdwg.mxu0
      %834 = vmatpush.bf16.msra.mxu0 0
      %835 = vmatpush.bf16.msra.mxu0 0
      %836 = vmatpush.bf16.msra.mxu0 0
      %837 = vmatpush.bf16.msra.mxu0 0
      %838 = vmatpush.bf16.msra.mxu0 0
      %839 = vmatpush.bf16.msra.mxu0 0
      %840 = vmatpush.bf16.msra.mxu0 0
      %841 = vmatpush.bf16.msra.mxu0 %v751
      %842 = vmatmul.bf16.gmra.mxu0 %v730
      %v843 = vpop.f32.mrf.mxu0
      %v844 = vadd.f32 0.0, %v843
      %v845 = vpop.f32.mrf.mxu0
      %846 = vdwg.mxu0
      %847 = vmatpush.bf16.msra.mxu0 0
      %848 = vmatpush.bf16.msra.mxu0 0
      %849 = vmatpush.bf16.msra.mxu0 0
      %850 = vmatpush.bf16.msra.mxu0 0
      %851 = vmatpush.bf16.msra.mxu0 0
      %852 = vmatpush.bf16.msra.mxu0 0
      %853 = vmatpush.bf16.msra.mxu0 0
      %854 = vmatpush.bf16.msra.mxu0 %v754
      %855 = vmatmul.bf16.gmra.mxu0 %v730
      %v856 = vpop.f32.mrf.mxu0
      %v857 = vadd.f32 0.0, %v856
      %v858 = vpop.f32.mrf.mxu0
      %859 = vdwg.mxu0
      %v860 = vadd.f32 %v606, %v766
      %v861 = vadd.f32 %v619, %v779
      %v862 = vadd.f32 %v632, %v792
      %v863 = vadd.f32 %v645, %v805
      %v864 = vadd.f32 %v658, %v818
      %v865 = vadd.f32 %v671, %v831
      %v866 = vadd.f32 %v684, %v844
      %v867 = vadd.f32 %v697, %v857
      %v868 = vld [vmem:[#allocation2 + $0x4] sm:$0xff]
      %v869 = vld [vmem:[#allocation2 + $0xc] sm:$0xff]
      %v870 = vld [vmem:[#allocation2 + $0x14] sm:$0xff]
      %v871 = vld [vmem:[#allocation2 + $0x1c] sm:$0xff]
      %s872 = scalar_lea.vmem %s2, 12
      %v873 = vld [vmem:[%s872] sm:$0xf]
      %v878 = vunpack.c.l.b16 %v868
      %v879 = vunpack.c.h.b16 %v868
      %v880 = vunpack.c.l.b16 %v869
      %v881 = vunpack.c.h.b16 %v869
      %v882 = vunpack.c.l.b16 %v870
      %v883 = vunpack.c.h.b16 %v870
      %v884 = vunpack.c.l.b16 %v871
      %v885 = vunpack.c.h.b16 %v871
      %v886 = vpack.c.b16 %v878, %v878
      %v887 = vpack.c.b16 %v879, %v879
      %v888 = vpack.c.b16 %v880, %v880
      %v889 = vpack.c.b16 %v881, %v881
      %v890 = vpack.c.b16 %v882, %v882
      %v891 = vpack.c.b16 %v883, %v883
      %v892 = vpack.c.b16 %v884, %v884
      %v893 = vpack.c.b16 %v885, %v885
      %v895 = vsel %vm436, %v873, 0
      %v898 = vsel %vm440, %v886, 0
      %v901 = vsel %vm440, %v887, 0
      %v904 = vsel %vm440, %v888, 0
      %v907 = vsel %vm440, %v889, 0
      %v910 = vsel %vm440, %v890, 0
      %v913 = vsel %vm440, %v891, 0
      %v916 = vsel %vm440, %v892, 0
      %v919 = vsel %vm440, %v893, 0
      %921 = vmatpush.bf16.msra.mxu0 0
      %922 = vmatpush.bf16.msra.mxu0 0
      %923 = vmatpush.bf16.msra.mxu0 0
      %924 = vmatpush.bf16.msra.mxu0 0
      %925 = vmatpush.bf16.msra.mxu0 0
      %926 = vmatpush.bf16.msra.mxu0 0
      %927 = vmatpush.bf16.msra.mxu0 0
      %928 = vmatpush.bf16.msra.mxu0 %v898
      %929 = vmatmul.bf16.gmra.mxu0 %v895
      %v930 = vpop.f32.mrf.mxu0
      %v931 = vadd.f32 0.0, %v930
      %v932 = vpop.f32.mrf.mxu0
      %933 = vdwg.mxu0
      %934 = vmatpush.bf16.msra.mxu0 0
      %935 = vmatpush.bf16.msra.mxu0 0
      %936 = vmatpush.bf16.msra.mxu0 0
      %937 = vmatpush.bf16.msra.mxu0 0
      %938 = vmatpush.bf16.msra.mxu0 0
      %939 = vmatpush.bf16.msra.mxu0 0
      %940 = vmatpush.bf16.msra.mxu0 0
      %941 = vmatpush.bf16.msra.mxu0 %v901
      %942 = vmatmul.bf16.gmra.mxu0 %v895
      %v943 = vpop.f32.mrf.mxu0
      %v944 = vadd.f32 0.0, %v943
      %v945 = vpop.f32.mrf.mxu0
      %946 = vdwg.mxu0
      %947 = vmatpush.bf16.msra.mxu0 0
      %948 = vmatpush.bf16.msra.mxu0 0
      %949 = vmatpush.bf16.msra.mxu0 0
      %950 = vmatpush.bf16.msra.mxu0 0
      %951 = vmatpush.bf16.msra.mxu0 0
      %952 = vmatpush.bf16.msra.mxu0 0
      %953 = vmatpush.bf16.msra.mxu0 0
      %954 = vmatpush.bf16.msra.mxu0 %v904
      %955 = vmatmul.bf16.gmra.mxu0 %v895
      %v956 = vpop.f32.mrf.mxu0
      %v957 = vadd.f32 0.0, %v956
      %v958 = vpop.f32.mrf.mxu0
      %959 = vdwg.mxu0
      %960 = vmatpush.bf16.msra.mxu0 0
      %961 = vmatpush.bf16.msra.mxu0 0
      %962 = vmatpush.bf16.msra.mxu0 0
      %963 = vmatpush.bf16.msra.mxu0 0
      %964 = vmatpush.bf16.msra.mxu0 0
      %965 = vmatpush.bf16.msra.mxu0 0
      %966 = vmatpush.bf16.msra.mxu0 0
      %967 = vmatpush.bf16.msra.mxu0 %v907
      %968 = vmatmul.bf16.gmra.mxu0 %v895
      %v969 = vpop.f32.mrf.mxu0
      %v970 = vadd.f32 0.0, %v969
      %v971 = vpop.f32.mrf.mxu0
      %972 = vdwg.mxu0
      %973 = vmatpush.bf16.msra.mxu0 0
      %974 = vmatpush.bf16.msra.mxu0 0
      %975 = vmatpush.bf16.msra.mxu0 0
      %976 = vmatpush.bf16.msra.mxu0 0
      %977 = vmatpush.bf16.msra.mxu0 0
      %978 = vmatpush.bf16.msra.mxu0 0
      %979 = vmatpush.bf16.msra.mxu0 0
      %980 = vmatpush.bf16.msra.mxu0 %v910
      %981 = vmatmul.bf16.gmra.mxu0 %v895
      %v982 = vpop.f32.mrf.mxu0
      %v983 = vadd.f32 0.0, %v982
      %v984 = vpop.f32.mrf.mxu0
      %985 = vdwg.mxu0
      %986 = vmatpush.bf16.msra.mxu0 0
      %987 = vmatpush.bf16.msra.mxu0 0
      %988 = vmatpush.bf16.msra.mxu0 0
      %989 = vmatpush.bf16.msra.mxu0 0
      %990 = vmatpush.bf16.msra.mxu0 0
      %991 = vmatpush.bf16.msra.mxu0 0
      %992 = vmatpush.bf16.msra.mxu0 0
      %993 = vmatpush.bf16.msra.mxu0 %v913
      %994 = vmatmul.bf16.gmra.mxu0 %v895
      %v995 = vpop.f32.mrf.mxu0
      %v996 = vadd.f32 0.0, %v995
      %v997 = vpop.f32.mrf.mxu0
      %998 = vdwg.mxu0
      %999 = vmatpush.bf16.msra.mxu0 0
      %1000 = vmatpush.bf16.msra.mxu0 0
      %1001 = vmatpush.bf16.msra.mxu0 0
      %1002 = vmatpush.bf16.msra.mxu0 0
      %1003 = vmatpush.bf16.msra.mxu0 0
      %1004 = vmatpush.bf16.msra.mxu0 0
      %1005 = vmatpush.bf16.msra.mxu0 0
      %1006 = vmatpush.bf16.msra.mxu0 %v916
      %1007 = vmatmul.bf16.gmra.mxu0 %v895
      %v1008 = vpop.f32.mrf.mxu0
      %v1009 = vadd.f32 0.0, %v1008
      %v1010 = vpop.f32.mrf.mxu0
      %1011 = vdwg.mxu0
      %1012 = vmatpush.bf16.msra.mxu0 0
      %1013 = vmatpush.bf16.msra.mxu0 0
      %1014 = vmatpush.bf16.msra.mxu0 0
      %1015 = vmatpush.bf16.msra.mxu0 0
      %1016 = vmatpush.bf16.msra.mxu0 0
      %1017 = vmatpush.bf16.msra.mxu0 0
      %1018 = vmatpush.bf16.msra.mxu0 0
      %1019 = vmatpush.bf16.msra.mxu0 %v919
      %1020 = vmatmul.bf16.gmra.mxu0 %v895
      %v1021 = vpop.f32.mrf.mxu0
      %v1022 = vadd.f32 0.0, %v1021
      %v1023 = vpop.f32.mrf.mxu0
      %1024 = vdwg.mxu0
      %v1025 = vadd.f32 %v860, %v931
      %v1026 = vadd.f32 %v861, %v944
      %v1027 = vadd.f32 %v862, %v957
      %v1028 = vadd.f32 %v863, %v970
      %v1029 = vadd.f32 %v864, %v983
      %v1030 = vadd.f32 %v865, %v996
      %v1031 = vadd.f32 %v866, %v1009
      %v1032 = vadd.f32 %v867, %v1022
      %v1033 = vld [vmem:[#allocation2 + $0x4] sm:$0xff]
      %v1034 = vld [vmem:[#allocation2 + $0xc] sm:$0xff]
      %v1035 = vld [vmem:[#allocation2 + $0x14] sm:$0xff]
      %v1036 = vld [vmem:[#allocation2 + $0x1c] sm:$0xff]
      %v1037 = vld [vmem:[#allocation2 + $0x24] sm:$0xf]
      %s1038 = scalar_lea.vmem %s2, 16
      %v1039 = vld [vmem:[%s1038] sm:$0xf]
      %v1045 = vunpack.c.l.b16 %v1033
      %v1046 = vunpack.c.h.b16 %v1033
      %v1047 = vunpack.c.l.b16 %v1034
      %v1048 = vunpack.c.h.b16 %v1034
      %v1049 = vunpack.c.l.b16 %v1035
      %v1050 = vunpack.c.h.b16 %v1035
      %v1051 = vunpack.c.l.b16 %v1036
      %v1052 = vunpack.c.h.b16 %v1036
      %v1053 = vunpack.c.l.b16 %v1037
      %v1054 = vpack.c.b16 %v1045, %v1045
      %v1055 = vpack.c.b16 %v1046, %v1046
      %v1056 = vpack.c.b16 %v1047, %v1047
      %v1057 = vpack.c.b16 %v1048, %v1048
      %v1058 = vpack.c.b16 %v1049, %v1049
      %v1059 = vpack.c.b16 %v1050, %v1050
      %v1060 = vpack.c.b16 %v1051, %v1051
      %v1061 = vpack.c.b16 %v1052, %v1052
      %v1062 = vpack.c.b16 %v1053, %v1053
      %1063 = vrot.lane.b32.xlu0 %v1054, 127
      %v1064 = vpop.permute.xlu0 %1063
      %1065 = vrot.lane.b32.xlu0 %v1055, 127
      %v1066 = vpop.permute.xlu0 %1065
      %1067 = vrot.lane.b32.xlu0 %v1056, 127
      %v1068 = vpop.permute.xlu0 %1067
      %1069 = vrot.lane.b32.xlu0 %v1057, 127
      %v1070 = vpop.permute.xlu0 %1069
      %1071 = vrot.lane.b32.xlu0 %v1058, 127
      %v1072 = vpop.permute.xlu0 %1071
      %1073 = vrot.lane.b32.xlu0 %v1059, 127
      %v1074 = vpop.permute.xlu0 %1073
      %1075 = vrot.lane.b32.xlu0 %v1060, 127
      %v1076 = vpop.permute.xlu0 %1075
      %1077 = vrot.lane.b32.xlu0 %v1061, 127
      %v1078 = vpop.permute.xlu0 %1077
      %1079 = vrot.lane.b32.xlu0 %v1062, 127
      %v1080 = vpop.permute.xlu0 %1079
      %v1081 = vsel %vm427, %v1064, %v1066
      %v1082 = vsel %vm427, %v1066, %v1068
      %v1083 = vsel %vm427, %v1068, %v1070
      %v1084 = vsel %vm427, %v1070, %v1072
      %v1085 = vsel %vm427, %v1072, %v1074
      %v1086 = vsel %vm427, %v1074, %v1076
      %v1087 = vsel %vm427, %v1076, %v1078
      %v1088 = vsel %vm427, %v1078, %v1080
      %v1090 = vsel %vm436, %v1039, 0
      %v1093 = vsel %vm440, %v1081, 0
      %v1096 = vsel %vm440, %v1082, 0
      %v1099 = vsel %vm440, %v1083, 0
      %v1102 = vsel %vm440, %v1084, 0
      %v1105 = vsel %vm440, %v1085, 0
      %v1108 = vsel %vm440, %v1086, 0
      %v1111 = vsel %vm440, %v1087, 0
      %v1114 = vsel %vm440, %v1088, 0
      %1116 = vmatpush.bf16.msra.mxu0 0
      %1117 = vmatpush.bf16.msra.mxu0 0
      %1118 = vmatpush.bf16.msra.mxu0 0
      %1119 = vmatpush.bf16.msra.mxu0 0
      %1120 = vmatpush.bf16.msra.mxu0 0
      %1121 = vmatpush.bf16.msra.mxu0 0
      %1122 = vmatpush.bf16.msra.mxu0 0
      %1123 = vmatpush.bf16.msra.mxu0 %v1093
      %1124 = vmatmul.bf16.gmra.mxu0 %v1090
      %v1125 = vpop.f32.mrf.mxu0
      %v1126 = vadd.f32 0.0, %v1125
      %v1127 = vpop.f32.mrf.mxu0
      %1128 = vdwg.mxu0
      %1129 = vmatpush.bf16.msra.mxu0 0
      %1130 = vmatpush.bf16.msra.mxu0 0
      %1131 = vmatpush.bf16.msra.mxu0 0
      %1132 = vmatpush.bf16.msra.mxu0 0
      %1133 = vmatpush.bf16.msra.mxu0 0
      %1134 = vmatpush.bf16.msra.mxu0 0
      %1135 = vmatpush.bf16.msra.mxu0 0
      %1136 = vmatpush.bf16.msra.mxu0 %v1096
      %1137 = vmatmul.bf16.gmra.mxu0 %v1090
      %v1138 = vpop.f32.mrf.mxu0
      %v1139 = vadd.f32 0.0, %v1138
      %v1140 = vpop.f32.mrf.mxu0
      %1141 = vdwg.mxu0
      %1142 = vmatpush.bf16.msra.mxu0 0
      %1143 = vmatpush.bf16.msra.mxu0 0
      %1144 = vmatpush.bf16.msra.mxu0 0
      %1145 = vmatpush.bf16.msra.mxu0 0
      %1146 = vmatpush.bf16.msra.mxu0 0
      %1147 = vmatpush.bf16.msra.mxu0 0
      %1148 = vmatpush.bf16.msra.mxu0 0
      %1149 = vmatpush.bf16.msra.mxu0 %v1099
      %1150 = vmatmul.bf16.gmra.mxu0 %v1090
      %v1151 = vpop.f32.mrf.mxu0
      %v1152 = vadd.f32 0.0, %v1151
      %v1153 = vpop.f32.mrf.mxu0
      %1154 = vdwg.mxu0
      %1155 = vmatpush.bf16.msra.mxu0 0
      %1156 = vmatpush.bf16.msra.mxu0 0
      %1157 = vmatpush.bf16.msra.mxu0 0
      %1158 = vmatpush.bf16.msra.mxu0 0
      %1159 = vmatpush.bf16.msra.mxu0 0
      %1160 = vmatpush.bf16.msra.mxu0 0
      %1161 = vmatpush.bf16.msra.mxu0 0
      %1162 = vmatpush.bf16.msra.mxu0 %v1102
      %1163 = vmatmul.bf16.gmra.mxu0 %v1090
      %v1164 = vpop.f32.mrf.mxu0
      %v1165 = vadd.f32 0.0, %v1164
      %v1166 = vpop.f32.mrf.mxu0
      %1167 = vdwg.mxu0
      %1168 = vmatpush.bf16.msra.mxu0 0
      %1169 = vmatpush.bf16.msra.mxu0 0
      %1170 = vmatpush.bf16.msra.mxu0 0
      %1171 = vmatpush.bf16.msra.mxu0 0
      %1172 = vmatpush.bf16.msra.mxu0 0
      %1173 = vmatpush.bf16.msra.mxu0 0
      %1174 = vmatpush.bf16.msra.mxu0 0
      %1175 = vmatpush.bf16.msra.mxu0 %v1105
      %1176 = vmatmul.bf16.gmra.mxu0 %v1090
      %v1177 = vpop.f32.mrf.mxu0
      %v1178 = vadd.f32 0.0, %v1177
      %v1179 = vpop.f32.mrf.mxu0
      %1180 = vdwg.mxu0
      %1181 = vmatpush.bf16.msra.mxu0 0
      %1182 = vmatpush.bf16.msra.mxu0 0
      %1183 = vmatpush.bf16.msra.mxu0 0
      %1184 = vmatpush.bf16.msra.mxu0 0
      %1185 = vmatpush.bf16.msra.mxu0 0
      %1186 = vmatpush.bf16.msra.mxu0 0
      %1187 = vmatpush.bf16.msra.mxu0 0
      %1188 = vmatpush.bf16.msra.mxu0 %v1108
      %1189 = vmatmul.bf16.gmra.mxu0 %v1090
      %v1190 = vpop.f32.mrf.mxu0
      %v1191 = vadd.f32 0.0, %v1190
      %v1192 = vpop.f32.mrf.mxu0
      %1193 = vdwg.mxu0
      %1194 = vmatpush.bf16.msra.mxu0 0
      %1195 = vmatpush.bf16.msra.mxu0 0
      %1196 = vmatpush.bf16.msra.mxu0 0
      %1197 = vmatpush.bf16.msra.mxu0 0
      %1198 = vmatpush.bf16.msra.mxu0 0
      %1199 = vmatpush.bf16.msra.mxu0 0
      %1200 = vmatpush.bf16.msra.mxu0 0
      %1201 = vmatpush.bf16.msra.mxu0 %v1111
      %1202 = vmatmul.bf16.gmra.mxu0 %v1090
      %v1203 = vpop.f32.mrf.mxu0
      %v1204 = vadd.f32 0.0, %v1203
      %v1205 = vpop.f32.mrf.mxu0
      %1206 = vdwg.mxu0
      %1207 = vmatpush.bf16.msra.mxu0 0
      %1208 = vmatpush.bf16.msra.mxu0 0
      %1209 = vmatpush.bf16.msra.mxu0 0
      %1210 = vmatpush.bf16.msra.mxu0 0
      %1211 = vmatpush.bf16.msra.mxu0 0
      %1212 = vmatpush.bf16.msra.mxu0 0
      %1213 = vmatpush.bf16.msra.mxu0 0
      %1214 = vmatpush.bf16.msra.mxu0 %v1114
      %1215 = vmatmul.bf16.gmra.mxu0 %v1090
      %v1216 = vpop.f32.mrf.mxu0
      %v1217 = vadd.f32 0.0, %v1216
      %v1218 = vpop.f32.mrf.mxu0
      %1219 = vdwg.mxu0
      %v1220 = vadd.f32 %v1025, %v1126
      %v1221 = vadd.f32 %v1026, %v1139
      %v1222 = vadd.f32 %v1027, %v1152
      %v1223 = vadd.f32 %v1028, %v1165
      %v1224 = vadd.f32 %v1029, %v1178
      %v1225 = vadd.f32 %v1030, %v1191
      %v1226 = vadd.f32 %v1031, %v1204
      %v1227 = vadd.f32 %v1032, %v1217
      %s1228 = scalar_lea.vmem %s2, 20
      %v1229 = vld [vmem:[%s1228] sm:$0xf]
      %1230 = vrot.lane.b32.xlu0 %v1054, 126
      %v1231 = vpop.permute.xlu0 %1230
      %1232 = vrot.lane.b32.xlu0 %v1055, 126
      %v1233 = vpop.permute.xlu0 %1232
      %1234 = vrot.lane.b32.xlu0 %v1056, 126
      %v1235 = vpop.permute.xlu0 %1234
      %1236 = vrot.lane.b32.xlu0 %v1057, 126
      %v1237 = vpop.permute.xlu0 %1236
      %1238 = vrot.lane.b32.xlu0 %v1058, 126
      %v1239 = vpop.permute.xlu0 %1238
      %1240 = vrot.lane.b32.xlu0 %v1059, 126
      %v1241 = vpop.permute.xlu0 %1240
      %1242 = vrot.lane.b32.xlu0 %v1060, 126
      %v1243 = vpop.permute.xlu0 %1242
      %1244 = vrot.lane.b32.xlu0 %v1061, 126
      %v1245 = vpop.permute.xlu0 %1244
      %1246 = vrot.lane.b32.xlu0 %v1062, 126
      %v1247 = vpop.permute.xlu0 %1246
      %v1248 = vsel %vm720, %v1231, %v1233
      %v1249 = vsel %vm720, %v1233, %v1235
      %v1250 = vsel %vm720, %v1235, %v1237
      %v1251 = vsel %vm720, %v1237, %v1239
      %v1252 = vsel %vm720, %v1239, %v1241
      %v1253 = vsel %vm720, %v1241, %v1243
      %v1254 = vsel %vm720, %v1243, %v1245
      %v1255 = vsel %vm720, %v1245, %v1247
      %v1257 = vsel %vm436, %v1229, 0
      %v1260 = vsel %vm440, %v1248, 0
      %v1263 = vsel %vm440, %v1249, 0
      %v1266 = vsel %vm440, %v1250, 0
      %v1269 = vsel %vm440, %v1251, 0
      %v1272 = vsel %vm440, %v1252, 0
      %v1275 = vsel %vm440, %v1253, 0
      %v1278 = vsel %vm440, %v1254, 0
      %v1281 = vsel %vm440, %v1255, 0
      %1283 = vmatpush.bf16.msra.mxu0 0
      %1284 = vmatpush.bf16.msra.mxu0 0
      %1285 = vmatpush.bf16.msra.mxu0 0
      %1286 = vmatpush.bf16.msra.mxu0 0
      %1287 = vmatpush.bf16.msra.mxu0 0
      %1288 = vmatpush.bf16.msra.mxu0 0
      %1289 = vmatpush.bf16.msra.mxu0 0
      %1290 = vmatpush.bf16.msra.mxu0 %v1260
      %1291 = vmatmul.bf16.gmra.mxu0 %v1257
      %v1292 = vpop.f32.mrf.mxu0
      %v1293 = vadd.f32 0.0, %v1292
      %v1294 = vpop.f32.mrf.mxu0
      %1295 = vdwg.mxu0
      %1296 = vmatpush.bf16.msra.mxu0 0
      %1297 = vmatpush.bf16.msra.mxu0 0
      %1298 = vmatpush.bf16.msra.mxu0 0
      %1299 = vmatpush.bf16.msra.mxu0 0
      %1300 = vmatpush.bf16.msra.mxu0 0
      %1301 = vmatpush.bf16.msra.mxu0 0
      %1302 = vmatpush.bf16.msra.mxu0 0
      %1303 = vmatpush.bf16.msra.mxu0 %v1263
      %1304 = vmatmul.bf16.gmra.mxu0 %v1257
      %v1305 = vpop.f32.mrf.mxu0
      %v1306 = vadd.f32 0.0, %v1305
      %v1307 = vpop.f32.mrf.mxu0
      %1308 = vdwg.mxu0
      %1309 = vmatpush.bf16.msra.mxu0 0
      %1310 = vmatpush.bf16.msra.mxu0 0
      %1311 = vmatpush.bf16.msra.mxu0 0
      %1312 = vmatpush.bf16.msra.mxu0 0
      %1313 = vmatpush.bf16.msra.mxu0 0
      %1314 = vmatpush.bf16.msra.mxu0 0
      %1315 = vmatpush.bf16.msra.mxu0 0
      %1316 = vmatpush.bf16.msra.mxu0 %v1266
      %1317 = vmatmul.bf16.gmra.mxu0 %v1257
      %v1318 = vpop.f32.mrf.mxu0
      %v1319 = vadd.f32 0.0, %v1318
      %v1320 = vpop.f32.mrf.mxu0
      %1321 = vdwg.mxu0
      %1322 = vmatpush.bf16.msra.mxu0 0
      %1323 = vmatpush.bf16.msra.mxu0 0
      %1324 = vmatpush.bf16.msra.mxu0 0
      %1325 = vmatpush.bf16.msra.mxu0 0
      %1326 = vmatpush.bf16.msra.mxu0 0
      %1327 = vmatpush.bf16.msra.mxu0 0
      %1328 = vmatpush.bf16.msra.mxu0 0
      %1329 = vmatpush.bf16.msra.mxu0 %v1269
      %1330 = vmatmul.bf16.gmra.mxu0 %v1257
      %v1331 = vpop.f32.mrf.mxu0
      %v1332 = vadd.f32 0.0, %v1331
      %v1333 = vpop.f32.mrf.mxu0
      %1334 = vdwg.mxu0
      %1335 = vmatpush.bf16.msra.mxu0 0
      %1336 = vmatpush.bf16.msra.mxu0 0
      %1337 = vmatpush.bf16.msra.mxu0 0
      %1338 = vmatpush.bf16.msra.mxu0 0
      %1339 = vmatpush.bf16.msra.mxu0 0
      %1340 = vmatpush.bf16.msra.mxu0 0
      %1341 = vmatpush.bf16.msra.mxu0 0
      %1342 = vmatpush.bf16.msra.mxu0 %v1272
      %1343 = vmatmul.bf16.gmra.mxu0 %v1257
      %v1344 = vpop.f32.mrf.mxu0
      %v1345 = vadd.f32 0.0, %v1344
      %v1346 = vpop.f32.mrf.mxu0
      %1347 = vdwg.mxu0
      %1348 = vmatpush.bf16.msra.mxu0 0
      %1349 = vmatpush.bf16.msra.mxu0 0
      %1350 = vmatpush.bf16.msra.mxu0 0
      %1351 = vmatpush.bf16.msra.mxu0 0
      %1352 = vmatpush.bf16.msra.mxu0 0
      %1353 = vmatpush.bf16.msra.mxu0 0
      %1354 = vmatpush.bf16.msra.mxu0 0
      %1355 = vmatpush.bf16.msra.mxu0 %v1275
      %1356 = vmatmul.bf16.gmra.mxu0 %v1257
      %v1357 = vpop.f32.mrf.mxu0
      %v1358 = vadd.f32 0.0, %v1357
      %v1359 = vpop.f32.mrf.mxu0
      %1360 = vdwg.mxu0
      %1361 = vmatpush.bf16.msra.mxu0 0
      %1362 = vmatpush.bf16.msra.mxu0 0
      %1363 = vmatpush.bf16.msra.mxu0 0
      %1364 = vmatpush.bf16.msra.mxu0 0
      %1365 = vmatpush.bf16.msra.mxu0 0
      %1366 = vmatpush.bf16.msra.mxu0 0
      %1367 = vmatpush.bf16.msra.mxu0 0
      %1368 = vmatpush.bf16.msra.mxu0 %v1278
      %1369 = vmatmul.bf16.gmra.mxu0 %v1257
      %v1370 = vpop.f32.mrf.mxu0
      %v1371 = vadd.f32 0.0, %v1370
      %v1372 = vpop.f32.mrf.mxu0
      %1373 = vdwg.mxu0
      %1374 = vmatpush.bf16.msra.mxu0 0
      %1375 = vmatpush.bf16.msra.mxu0 0
      %1376 = vmatpush.bf16.msra.mxu0 0
      %1377 = vmatpush.bf16.msra.mxu0 0
      %1378 = vmatpush.bf16.msra.mxu0 0
      %1379 = vmatpush.bf16.msra.mxu0 0
      %1380 = vmatpush.bf16.msra.mxu0 0
      %1381 = vmatpush.bf16.msra.mxu0 %v1281
      %1382 = vmatmul.bf16.gmra.mxu0 %v1257
      %v1383 = vpop.f32.mrf.mxu0
      %v1384 = vadd.f32 0.0, %v1383
      %v1385 = vpop.f32.mrf.mxu0
      %1386 = vdwg.mxu0
      %v1387 = vadd.f32 %v1220, %v1293
      %v1388 = vadd.f32 %v1221, %v1306
      %v1389 = vadd.f32 %v1222, %v1319
      %v1390 = vadd.f32 %v1223, %v1332
      %v1391 = vadd.f32 %v1224, %v1345
      %v1392 = vadd.f32 %v1225, %v1358
      %v1393 = vadd.f32 %v1226, %v1371
      %v1394 = vadd.f32 %v1227, %v1384
      %v1395 = vld [vmem:[#allocation2 + $0x8] sm:$0xff]
      %v1396 = vld [vmem:[#allocation2 + $0x10] sm:$0xff]
      %v1397 = vld [vmem:[#allocation2 + $0x18] sm:$0xff]
      %v1398 = vld [vmem:[#allocation2 + $0x20] sm:$0xff]
      %s1399 = scalar_lea.vmem %s2, 24
      %v1400 = vld [vmem:[%s1399] sm:$0xf]
      %v1405 = vunpack.c.l.b16 %v1395
      %v1406 = vunpack.c.h.b16 %v1395
      %v1407 = vunpack.c.l.b16 %v1396
      %v1408 = vunpack.c.h.b16 %v1396
      %v1409 = vunpack.c.l.b16 %v1397
      %v1410 = vunpack.c.h.b16 %v1397
      %v1411 = vunpack.c.l.b16 %v1398
      %v1412 = vunpack.c.h.b16 %v1398
      %v1413 = vpack.c.b16 %v1405, %v1405
      %v1414 = vpack.c.b16 %v1406, %v1406
      %v1415 = vpack.c.b16 %v1407, %v1407
      %v1416 = vpack.c.b16 %v1408, %v1408
      %v1417 = vpack.c.b16 %v1409, %v1409
      %v1418 = vpack.c.b16 %v1410, %v1410
      %v1419 = vpack.c.b16 %v1411, %v1411
      %v1420 = vpack.c.b16 %v1412, %v1412
      %v1422 = vsel %vm436, %v1400, 0
      %v1425 = vsel %vm440, %v1413, 0
      %v1428 = vsel %vm440, %v1414, 0
      %v1431 = vsel %vm440, %v1415, 0
      %v1434 = vsel %vm440, %v1416, 0
      %v1437 = vsel %vm440, %v1417, 0
      %v1440 = vsel %vm440, %v1418, 0
      %v1443 = vsel %vm440, %v1419, 0
      %v1446 = vsel %vm440, %v1420, 0
      %1448 = vmatpush.bf16.msra.mxu0 0
      %1449 = vmatpush.bf16.msra.mxu0 0
      %1450 = vmatpush.bf16.msra.mxu0 0
      %1451 = vmatpush.bf16.msra.mxu0 0
      %1452 = vmatpush.bf16.msra.mxu0 0
      %1453 = vmatpush.bf16.msra.mxu0 0
      %1454 = vmatpush.bf16.msra.mxu0 0
      %1455 = vmatpush.bf16.msra.mxu0 %v1425
      %1456 = vmatmul.bf16.gmra.mxu0 %v1422
      %v1457 = vpop.f32.mrf.mxu0
      %v1458 = vadd.f32 0.0, %v1457
      %v1459 = vpop.f32.mrf.mxu0
      %1460 = vdwg.mxu0
      %1461 = vmatpush.bf16.msra.mxu0 0
      %1462 = vmatpush.bf16.msra.mxu0 0
      %1463 = vmatpush.bf16.msra.mxu0 0
      %1464 = vmatpush.bf16.msra.mxu0 0
      %1465 = vmatpush.bf16.msra.mxu0 0
      %1466 = vmatpush.bf16.msra.mxu0 0
      %1467 = vmatpush.bf16.msra.mxu0 0
      %1468 = vmatpush.bf16.msra.mxu0 %v1428
      %1469 = vmatmul.bf16.gmra.mxu0 %v1422
      %v1470 = vpop.f32.mrf.mxu0
      %v1471 = vadd.f32 0.0, %v1470
      %v1472 = vpop.f32.mrf.mxu0
      %1473 = vdwg.mxu0
      %1474 = vmatpush.bf16.msra.mxu0 0
      %1475 = vmatpush.bf16.msra.mxu0 0
      %1476 = vmatpush.bf16.msra.mxu0 0
      %1477 = vmatpush.bf16.msra.mxu0 0
      %1478 = vmatpush.bf16.msra.mxu0 0
      %1479 = vmatpush.bf16.msra.mxu0 0
      %1480 = vmatpush.bf16.msra.mxu0 0
      %1481 = vmatpush.bf16.msra.mxu0 %v1431
      %1482 = vmatmul.bf16.gmra.mxu0 %v1422
      %v1483 = vpop.f32.mrf.mxu0
      %v1484 = vadd.f32 0.0, %v1483
      %v1485 = vpop.f32.mrf.mxu0
      %1486 = vdwg.mxu0
      %1487 = vmatpush.bf16.msra.mxu0 0
      %1488 = vmatpush.bf16.msra.mxu0 0
      %1489 = vmatpush.bf16.msra.mxu0 0
      %1490 = vmatpush.bf16.msra.mxu0 0
      %1491 = vmatpush.bf16.msra.mxu0 0
      %1492 = vmatpush.bf16.msra.mxu0 0
      %1493 = vmatpush.bf16.msra.mxu0 0
      %1494 = vmatpush.bf16.msra.mxu0 %v1434
      %1495 = vmatmul.bf16.gmra.mxu0 %v1422
      %v1496 = vpop.f32.mrf.mxu0
      %v1497 = vadd.f32 0.0, %v1496
      %v1498 = vpop.f32.mrf.mxu0
      %1499 = vdwg.mxu0
      %1500 = vmatpush.bf16.msra.mxu0 0
      %1501 = vmatpush.bf16.msra.mxu0 0
      %1502 = vmatpush.bf16.msra.mxu0 0
      %1503 = vmatpush.bf16.msra.mxu0 0
      %1504 = vmatpush.bf16.msra.mxu0 0
      %1505 = vmatpush.bf16.msra.mxu0 0
      %1506 = vmatpush.bf16.msra.mxu0 0
      %1507 = vmatpush.bf16.msra.mxu0 %v1437
      %1508 = vmatmul.bf16.gmra.mxu0 %v1422
      %v1509 = vpop.f32.mrf.mxu0
      %v1510 = vadd.f32 0.0, %v1509
      %v1511 = vpop.f32.mrf.mxu0
      %1512 = vdwg.mxu0
      %1513 = vmatpush.bf16.msra.mxu0 0
      %1514 = vmatpush.bf16.msra.mxu0 0
      %1515 = vmatpush.bf16.msra.mxu0 0
      %1516 = vmatpush.bf16.msra.mxu0 0
      %1517 = vmatpush.bf16.msra.mxu0 0
      %1518 = vmatpush.bf16.msra.mxu0 0
      %1519 = vmatpush.bf16.msra.mxu0 0
      %1520 = vmatpush.bf16.msra.mxu0 %v1440
      %1521 = vmatmul.bf16.gmra.mxu0 %v1422
      %v1522 = vpop.f32.mrf.mxu0
      %v1523 = vadd.f32 0.0, %v1522
      %v1524 = vpop.f32.mrf.mxu0
      %1525 = vdwg.mxu0
      %1526 = vmatpush.bf16.msra.mxu0 0
      %1527 = vmatpush.bf16.msra.mxu0 0
      %1528 = vmatpush.bf16.msra.mxu0 0
      %1529 = vmatpush.bf16.msra.mxu0 0
      %1530 = vmatpush.bf16.msra.mxu0 0
      %1531 = vmatpush.bf16.msra.mxu0 0
      %1532 = vmatpush.bf16.msra.mxu0 0
      %1533 = vmatpush.bf16.msra.mxu0 %v1443
      %1534 = vmatmul.bf16.gmra.mxu0 %v1422
      %v1535 = vpop.f32.mrf.mxu0
      %v1536 = vadd.f32 0.0, %v1535
      %v1537 = vpop.f32.mrf.mxu0
      %1538 = vdwg.mxu0
      %1539 = vmatpush.bf16.msra.mxu0 0
      %1540 = vmatpush.bf16.msra.mxu0 0
      %1541 = vmatpush.bf16.msra.mxu0 0
      %1542 = vmatpush.bf16.msra.mxu0 0
      %1543 = vmatpush.bf16.msra.mxu0 0
      %1544 = vmatpush.bf16.msra.mxu0 0
      %1545 = vmatpush.bf16.msra.mxu0 0
      %1546 = vmatpush.bf16.msra.mxu0 %v1446
      %1547 = vmatmul.bf16.gmra.mxu0 %v1422
      %v1548 = vpop.f32.mrf.mxu0
      %v1549 = vadd.f32 0.0, %v1548
      %v1550 = vpop.f32.mrf.mxu0
      %1551 = vdwg.mxu0
      %v1552 = vadd.f32 %v1387, %v1458
      %v1553 = vadd.f32 %v1388, %v1471
      %v1554 = vadd.f32 %v1389, %v1484
      %v1555 = vadd.f32 %v1390, %v1497
      %v1556 = vadd.f32 %v1391, %v1510
      %v1557 = vadd.f32 %v1392, %v1523
      %v1558 = vadd.f32 %v1393, %v1536
      %v1559 = vadd.f32 %v1394, %v1549
      %v1560 = vld [vmem:[#allocation2 + $0x8] sm:$0xff]
      %v1561 = vld [vmem:[#allocation2 + $0x10] sm:$0xff]
      %v1562 = vld [vmem:[#allocation2 + $0x18] sm:$0xff]
      %v1563 = vld [vmem:[#allocation2 + $0x20] sm:$0xff]
      %v1564 = vld [vmem:[#allocation2 + $0x28] sm:$0xf]
      %s1565 = scalar_lea.vmem %s2, 28
      %v1566 = vld [vmem:[%s1565] sm:$0xf]
      %v1572 = vunpack.c.l.b16 %v1560
      %v1573 = vunpack.c.h.b16 %v1560
      %v1574 = vunpack.c.l.b16 %v1561
      %v1575 = vunpack.c.h.b16 %v1561
      %v1576 = vunpack.c.l.b16 %v1562
      %v1577 = vunpack.c.h.b16 %v1562
      %v1578 = vunpack.c.l.b16 %v1563
      %v1579 = vunpack.c.h.b16 %v1563
      %v1580 = vunpack.c.l.b16 %v1564
      %v1581 = vpack.c.b16 %v1572, %v1572
      %v1582 = vpack.c.b16 %v1573, %v1573
      %v1583 = vpack.c.b16 %v1574, %v1574
      %v1584 = vpack.c.b16 %v1575, %v1575
      %v1585 = vpack.c.b16 %v1576, %v1576
      %v1586 = vpack.c.b16 %v1577, %v1577
      %v1587 = vpack.c.b16 %v1578, %v1578
      %v1588 = vpack.c.b16 %v1579, %v1579
      %v1589 = vpack.c.b16 %v1580, %v1580
      %1590 = vrot.lane.b32.xlu0 %v1581, 127
      %v1591 = vpop.permute.xlu0 %1590
      %1592 = vrot.lane.b32.xlu0 %v1582, 127
      %v1593 = vpop.permute.xlu0 %1592
      %1594 = vrot.lane.b32.xlu0 %v1583, 127
      %v1595 = vpop.permute.xlu0 %1594
      %1596 = vrot.lane.b32.xlu0 %v1584, 127
      %v1597 = vpop.permute.xlu0 %1596
      %1598 = vrot.lane.b32.xlu0 %v1585, 127
      %v1599 = vpop.permute.xlu0 %1598
      %1600 = vrot.lane.b32.xlu0 %v1586, 127
      %v1601 = vpop.permute.xlu0 %1600
      %1602 = vrot.lane.b32.xlu0 %v1587, 127
      %v1603 = vpop.permute.xlu0 %1602
      %1604 = vrot.lane.b32.xlu0 %v1588, 127
      %v1605 = vpop.permute.xlu0 %1604
      %1606 = vrot.lane.b32.xlu0 %v1589, 127
      %v1607 = vpop.permute.xlu0 %1606
      %v1608 = vsel %vm427, %v1591, %v1593
      %v1609 = vsel %vm427, %v1593, %v1595
      %v1610 = vsel %vm427, %v1595, %v1597
      %v1611 = vsel %vm427, %v1597, %v1599
      %v1612 = vsel %vm427, %v1599, %v1601
      %v1613 = vsel %vm427, %v1601, %v1603
      %v1614 = vsel %vm427, %v1603, %v1605
      %v1615 = vsel %vm427, %v1605, %v1607
      %v1617 = vsel %vm436, %v1566, 0
      %v1620 = vsel %vm440, %v1608, 0
      %v1623 = vsel %vm440, %v1609, 0
      %v1626 = vsel %vm440, %v1610, 0
      %v1629 = vsel %vm440, %v1611, 0
      %v1632 = vsel %vm440, %v1612, 0
      %v1635 = vsel %vm440, %v1613, 0
      %v1638 = vsel %vm440, %v1614, 0
      %v1641 = vsel %vm440, %v1615, 0
      %1643 = vmatpush.bf16.msra.mxu0 0
      %1644 = vmatpush.bf16.msra.mxu0 0
      %1645 = vmatpush.bf16.msra.mxu0 0
      %1646 = vmatpush.bf16.msra.mxu0 0
      %1647 = vmatpush.bf16.msra.mxu0 0
      %1648 = vmatpush.bf16.msra.mxu0 0
      %1649 = vmatpush.bf16.msra.mxu0 0
      %1650 = vmatpush.bf16.msra.mxu0 %v1620
      %1651 = vmatmul.bf16.gmra.mxu0 %v1617
      %v1652 = vpop.f32.mrf.mxu0
      %v1653 = vadd.f32 0.0, %v1652
      %v1654 = vpop.f32.mrf.mxu0
      %1655 = vdwg.mxu0
      %1656 = vmatpush.bf16.msra.mxu0 0
      %1657 = vmatpush.bf16.msra.mxu0 0
      %1658 = vmatpush.bf16.msra.mxu0 0
      %1659 = vmatpush.bf16.msra.mxu0 0
      %1660 = vmatpush.bf16.msra.mxu0 0
      %1661 = vmatpush.bf16.msra.mxu0 0
      %1662 = vmatpush.bf16.msra.mxu0 0
      %1663 = vmatpush.bf16.msra.mxu0 %v1623
      %1664 = vmatmul.bf16.gmra.mxu0 %v1617
      %v1665 = vpop.f32.mrf.mxu0
      %v1666 = vadd.f32 0.0, %v1665
      %v1667 = vpop.f32.mrf.mxu0
      %1668 = vdwg.mxu0
      %1669 = vmatpush.bf16.msra.mxu0 0
      %1670 = vmatpush.bf16.msra.mxu0 0
      %1671 = vmatpush.bf16.msra.mxu0 0
      %1672 = vmatpush.bf16.msra.mxu0 0
      %1673 = vmatpush.bf16.msra.mxu0 0
      %1674 = vmatpush.bf16.msra.mxu0 0
      %1675 = vmatpush.bf16.msra.mxu0 0
      %1676 = vmatpush.bf16.msra.mxu0 %v1626
      %1677 = vmatmul.bf16.gmra.mxu0 %v1617
      %v1678 = vpop.f32.mrf.mxu0
      %v1679 = vadd.f32 0.0, %v1678
      %v1680 = vpop.f32.mrf.mxu0
      %1681 = vdwg.mxu0
      %1682 = vmatpush.bf16.msra.mxu0 0
      %1683 = vmatpush.bf16.msra.mxu0 0
      %1684 = vmatpush.bf16.msra.mxu0 0
      %1685 = vmatpush.bf16.msra.mxu0 0
      %1686 = vmatpush.bf16.msra.mxu0 0
      %1687 = vmatpush.bf16.msra.mxu0 0
      %1688 = vmatpush.bf16.msra.mxu0 0
      %1689 = vmatpush.bf16.msra.mxu0 %v1629
      %1690 = vmatmul.bf16.gmra.mxu0 %v1617
      %v1691 = vpop.f32.mrf.mxu0
      %v1692 = vadd.f32 0.0, %v1691
      %v1693 = vpop.f32.mrf.mxu0
      %1694 = vdwg.mxu0
      %1695 = vmatpush.bf16.msra.mxu0 0
      %1696 = vmatpush.bf16.msra.mxu0 0
      %1697 = vmatpush.bf16.msra.mxu0 0
      %1698 = vmatpush.bf16.msra.mxu0 0
      %1699 = vmatpush.bf16.msra.mxu0 0
      %1700 = vmatpush.bf16.msra.mxu0 0
      %1701 = vmatpush.bf16.msra.mxu0 0
      %1702 = vmatpush.bf16.msra.mxu0 %v1632
      %1703 = vmatmul.bf16.gmra.mxu0 %v1617
      %v1704 = vpop.f32.mrf.mxu0
      %v1705 = vadd.f32 0.0, %v1704
      %v1706 = vpop.f32.mrf.mxu0
      %1707 = vdwg.mxu0
      %1708 = vmatpush.bf16.msra.mxu0 0
      %1709 = vmatpush.bf16.msra.mxu0 0
      %1710 = vmatpush.bf16.msra.mxu0 0
      %1711 = vmatpush.bf16.msra.mxu0 0
      %1712 = vmatpush.bf16.msra.mxu0 0
      %1713 = vmatpush.bf16.msra.mxu0 0
      %1714 = vmatpush.bf16.msra.mxu0 0
      %1715 = vmatpush.bf16.msra.mxu0 %v1635
      %1716 = vmatmul.bf16.gmra.mxu0 %v1617
      %v1717 = vpop.f32.mrf.mxu0
      %v1718 = vadd.f32 0.0, %v1717
      %v1719 = vpop.f32.mrf.mxu0
      %1720 = vdwg.mxu0
      %1721 = vmatpush.bf16.msra.mxu0 0
      %1722 = vmatpush.bf16.msra.mxu0 0
      %1723 = vmatpush.bf16.msra.mxu0 0
      %1724 = vmatpush.bf16.msra.mxu0 0
      %1725 = vmatpush.bf16.msra.mxu0 0
      %1726 = vmatpush.bf16.msra.mxu0 0
      %1727 = vmatpush.bf16.msra.mxu0 0
      %1728 = vmatpush.bf16.msra.mxu0 %v1638
      %1729 = vmatmul.bf16.gmra.mxu0 %v1617
      %v1730 = vpop.f32.mrf.mxu0
      %v1731 = vadd.f32 0.0, %v1730
      %v1732 = vpop.f32.mrf.mxu0
      %1733 = vdwg.mxu0
      %1734 = vmatpush.bf16.msra.mxu0 0
      %1735 = vmatpush.bf16.msra.mxu0 0
      %1736 = vmatpush.bf16.msra.mxu0 0
      %1737 = vmatpush.bf16.msra.mxu0 0
      %1738 = vmatpush.bf16.msra.mxu0 0
      %1739 = vmatpush.bf16.msra.mxu0 0
      %1740 = vmatpush.bf16.msra.mxu0 0
      %1741 = vmatpush.bf16.msra.mxu0 %v1641
      %1742 = vmatmul.bf16.gmra.mxu0 %v1617
      %v1743 = vpop.f32.mrf.mxu0
      %v1744 = vadd.f32 0.0, %v1743
      %v1745 = vpop.f32.mrf.mxu0
      %1746 = vdwg.mxu0
      %v1747 = vadd.f32 %v1552, %v1653
      %v1748 = vadd.f32 %v1553, %v1666
      %v1749 = vadd.f32 %v1554, %v1679
      %v1750 = vadd.f32 %v1555, %v1692
      %v1751 = vadd.f32 %v1556, %v1705
      %v1752 = vadd.f32 %v1557, %v1718
      %v1753 = vadd.f32 %v1558, %v1731
      %v1754 = vadd.f32 %v1559, %v1744
      %s1755 = scalar_lea.vmem %s2, 32
      %v1756 = vld [vmem:[%s1755] sm:$0xf]
      %1757 = vrot.lane.b32.xlu0 %v1581, 126
      %v1758 = vpop.permute.xlu0 %1757
      %1759 = vrot.lane.b32.xlu0 %v1582, 126
      %v1760 = vpop.permute.xlu0 %1759
      %1761 = vrot.lane.b32.xlu0 %v1583, 126
      %v1762 = vpop.permute.xlu0 %1761
      %1763 = vrot.lane.b32.xlu0 %v1584, 126
      %v1764 = vpop.permute.xlu0 %1763
      %1765 = vrot.lane.b32.xlu0 %v1585, 126
      %v1766 = vpop.permute.xlu0 %1765
      %1767 = vrot.lane.b32.xlu0 %v1586, 126
      %v1768 = vpop.permute.xlu0 %1767
      %1769 = vrot.lane.b32.xlu0 %v1587, 126
      %v1770 = vpop.permute.xlu0 %1769
      %1771 = vrot.lane.b32.xlu0 %v1588, 126
      %v1772 = vpop.permute.xlu0 %1771
      %1773 = vrot.lane.b32.xlu0 %v1589, 126
      %v1774 = vpop.permute.xlu0 %1773
      %v1775 = vsel %vm720, %v1758, %v1760
      %v1776 = vsel %vm720, %v1760, %v1762
      %v1777 = vsel %vm720, %v1762, %v1764
      %v1778 = vsel %vm720, %v1764, %v1766
      %v1779 = vsel %vm720, %v1766, %v1768
      %v1780 = vsel %vm720, %v1768, %v1770
      %v1781 = vsel %vm720, %v1770, %v1772
      %v1782 = vsel %vm720, %v1772, %v1774
      %v1784 = vsel %vm436, %v1756, 0
      %v1787 = vsel %vm440, %v1775, 0
      %v1790 = vsel %vm440, %v1776, 0
      %v1793 = vsel %vm440, %v1777, 0
      %v1796 = vsel %vm440, %v1778, 0
      %v1799 = vsel %vm440, %v1779, 0
      %v1802 = vsel %vm440, %v1780, 0
      %v1805 = vsel %vm440, %v1781, 0
      %v1808 = vsel %vm440, %v1782, 0
      %1810 = vmatpush.bf16.msra.mxu0 0
      %1811 = vmatpush.bf16.msra.mxu0 0
      %1812 = vmatpush.bf16.msra.mxu0 0
      %1813 = vmatpush.bf16.msra.mxu0 0
      %1814 = vmatpush.bf16.msra.mxu0 0
      %1815 = vmatpush.bf16.msra.mxu0 0
      %1816 = vmatpush.bf16.msra.mxu0 0
      %1817 = vmatpush.bf16.msra.mxu0 %v1787
      %1818 = vmatmul.bf16.gmra.mxu0 %v1784
      %v1819 = vpop.f32.mrf.mxu0
      %v1820 = vadd.f32 0.0, %v1819
      %v1821 = vpop.f32.mrf.mxu0
      %1822 = vdwg.mxu0
      %1823 = vmatpush.bf16.msra.mxu0 0
      %1824 = vmatpush.bf16.msra.mxu0 0
      %1825 = vmatpush.bf16.msra.mxu0 0
      %1826 = vmatpush.bf16.msra.mxu0 0
      %1827 = vmatpush.bf16.msra.mxu0 0
      %1828 = vmatpush.bf16.msra.mxu0 0
      %1829 = vmatpush.bf16.msra.mxu0 0
      %1830 = vmatpush.bf16.msra.mxu0 %v1790
      %1831 = vmatmul.bf16.gmra.mxu0 %v1784
      %v1832 = vpop.f32.mrf.mxu0
      %v1833 = vadd.f32 0.0, %v1832
      %v1834 = vpop.f32.mrf.mxu0
      %1835 = vdwg.mxu0
      %1836 = vmatpush.bf16.msra.mxu0 0
      %1837 = vmatpush.bf16.msra.mxu0 0
      %1838 = vmatpush.bf16.msra.mxu0 0
      %1839 = vmatpush.bf16.msra.mxu0 0
      %1840 = vmatpush.bf16.msra.mxu0 0
      %1841 = vmatpush.bf16.msra.mxu0 0
      %1842 = vmatpush.bf16.msra.mxu0 0
      %1843 = vmatpush.bf16.msra.mxu0 %v1793
      %1844 = vmatmul.bf16.gmra.mxu0 %v1784
      %v1845 = vpop.f32.mrf.mxu0
      %v1846 = vadd.f32 0.0, %v1845
      %v1847 = vpop.f32.mrf.mxu0
      %1848 = vdwg.mxu0
      %1849 = vmatpush.bf16.msra.mxu0 0
      %1850 = vmatpush.bf16.msra.mxu0 0
      %1851 = vmatpush.bf16.msra.mxu0 0
      %1852 = vmatpush.bf16.msra.mxu0 0
      %1853 = vmatpush.bf16.msra.mxu0 0
      %1854 = vmatpush.bf16.msra.mxu0 0
      %1855 = vmatpush.bf16.msra.mxu0 0
      %1856 = vmatpush.bf16.msra.mxu0 %v1796
      %1857 = vmatmul.bf16.gmra.mxu0 %v1784
      %v1858 = vpop.f32.mrf.mxu0
      %v1859 = vadd.f32 0.0, %v1858
      %v1860 = vpop.f32.mrf.mxu0
      %1861 = vdwg.mxu0
      %1862 = vmatpush.bf16.msra.mxu0 0
      %1863 = vmatpush.bf16.msra.mxu0 0
      %1864 = vmatpush.bf16.msra.mxu0 0
      %1865 = vmatpush.bf16.msra.mxu0 0
      %1866 = vmatpush.bf16.msra.mxu0 0
      %1867 = vmatpush.bf16.msra.mxu0 0
      %1868 = vmatpush.bf16.msra.mxu0 0
      %1869 = vmatpush.bf16.msra.mxu0 %v1799
      %1870 = vmatmul.bf16.gmra.mxu0 %v1784
      %v1871 = vpop.f32.mrf.mxu0
      %v1872 = vadd.f32 0.0, %v1871
      %v1873 = vpop.f32.mrf.mxu0
      %1874 = vdwg.mxu0
      %1875 = vmatpush.bf16.msra.mxu0 0
      %1876 = vmatpush.bf16.msra.mxu0 0
      %1877 = vmatpush.bf16.msra.mxu0 0
      %1878 = vmatpush.bf16.msra.mxu0 0
      %1879 = vmatpush.bf16.msra.mxu0 0
      %1880 = vmatpush.bf16.msra.mxu0 0
      %1881 = vmatpush.bf16.msra.mxu0 0
      %1882 = vmatpush.bf16.msra.mxu0 %v1802
      %1883 = vmatmul.bf16.gmra.mxu0 %v1784
      %v1884 = vpop.f32.mrf.mxu0
      %v1885 = vadd.f32 0.0, %v1884
      %v1886 = vpop.f32.mrf.mxu0
      %1887 = vdwg.mxu0
      %1888 = vmatpush.bf16.msra.mxu0 0
      %1889 = vmatpush.bf16.msra.mxu0 0
      %1890 = vmatpush.bf16.msra.mxu0 0
      %1891 = vmatpush.bf16.msra.mxu0 0
      %1892 = vmatpush.bf16.msra.mxu0 0
      %1893 = vmatpush.bf16.msra.mxu0 0
      %1894 = vmatpush.bf16.msra.mxu0 0
      %1895 = vmatpush.bf16.msra.mxu0 %v1805
      %1896 = vmatmul.bf16.gmra.mxu0 %v1784
      %v1897 = vpop.f32.mrf.mxu0
      %v1898 = vadd.f32 0.0, %v1897
      %v1899 = vpop.f32.mrf.mxu0
      %1900 = vdwg.mxu0
      %1901 = vmatpush.bf16.msra.mxu0 0
      %1902 = vmatpush.bf16.msra.mxu0 0
      %1903 = vmatpush.bf16.msra.mxu0 0
      %1904 = vmatpush.bf16.msra.mxu0 0
      %1905 = vmatpush.bf16.msra.mxu0 0
      %1906 = vmatpush.bf16.msra.mxu0 0
      %1907 = vmatpush.bf16.msra.mxu0 0
      %1908 = vmatpush.bf16.msra.mxu0 %v1808
      %1909 = vmatmul.bf16.gmra.mxu0 %v1784
      %v1910 = vpop.f32.mrf.mxu0
      %v1911 = vadd.f32 0.0, %v1910
      %v1912 = vpop.f32.mrf.mxu0
      %1913 = vdwg.mxu0
      %v1914 = vadd.f32 %v1747, %v1820
      %v1915 = vadd.f32 %v1748, %v1833
      %v1916 = vadd.f32 %v1749, %v1846
      %v1917 = vadd.f32 %v1750, %v1859
      %v1918 = vadd.f32 %v1751, %v1872
      %v1919 = vadd.f32 %v1752, %v1885
      %v1920 = vadd.f32 %v1753, %v1898
      %v1921 = vadd.f32 %v1754, %v1911
      %v1922 = vld [vmem:[%s3] sm:$0xff]
      %v1924 = vperm.slane %v1922, 0
      %v1925 = vperm.slane %v1922, 1
      %v1926 = vperm.slane %v1922, 2
      %v1927 = vperm.slane %v1922, 3
      %v1928 = vperm.slane %v1922, 4
      %v1929 = vperm.slane %v1922, 5
      %v1930 = vperm.slane %v1922, 6
      %v1931 = vperm.slane %v1922, 7
      %v1940 = vmul.f32 %v1914, %v1924
      %v1941 = vmul.f32 %v1915, %v1925
      %v1942 = vmul.f32 %v1916, %v1926
      %v1943 = vmul.f32 %v1917, %v1927
      %v1944 = vmul.f32 %v1918, %v1928
      %v1945 = vmul.f32 %v1919, %v1929
      %v1946 = vmul.f32 %v1920, %v1930
      %v1947 = vmul.f32 %v1921, %v1931
      %v1948 = vld [vmem:[%s350] sm:$0xff]
      %v1949 = vadd.f32 %v1940, %v1941
      %v1950 = vadd.f32 %v1949, %v1942
      %v1951 = vadd.f32 %v1950, %v1943
      %v1952 = vadd.f32 %v1951, %v1944
      %v1953 = vadd.f32 %v1952, %v1945
      %v1954 = vadd.f32 %v1953, %v1946
      %v1955 = vadd.f32 %v1954, %v1947
      %1956 = vadd.xlane.f32.xlu0 %v1955
      %v1957 = vpop.xlane.xlu0 %1956
      %v1958 = vadd.f32 %v1948, %v1957
      %1959 = vst [vmem:[%s350] sm:$0xff] %v1958
      %v1960 = vld [vmem:[%s354] sm:$0xff]
      %v1961 = vmul.f32 %v1940, %v1914
      %v1962 = vmul.f32 %v1941, %v1915
      %v1963 = vmul.f32 %v1942, %v1916
      %v1964 = vmul.f32 %v1943, %v1917
      %v1965 = vmul.f32 %v1944, %v1918
      %v1966 = vmul.f32 %v1945, %v1919
      %v1967 = vmul.f32 %v1946, %v1920
      %v1968 = vmul.f32 %v1947, %v1921
      %v1969 = vadd.f32 %v1961, %v1962
      %v1970 = vadd.f32 %v1969, %v1963
      %v1971 = vadd.f32 %v1970, %v1964
      %v1972 = vadd.f32 %v1971, %v1965
      %v1973 = vadd.f32 %v1972, %v1966
      %v1974 = vadd.f32 %v1973, %v1967
      %v1975 = vadd.f32 %v1974, %v1968
      %1976 = vadd.xlane.f32.xlu0 %v1975
      %v1977 = vpop.xlane.xlu0 %1976
      %v1978 = vadd.f32 %v1960, %v1977
      %1979 = vst [vmem:[%s354] sm:$0xff] %v1978
      %v1980 = vpack.c.bf16 %v1915, %v1914
      %v1981 = vpack.c.bf16 %v1917, %v1916
      %v1982 = vpack.c.bf16 %v1919, %v1918
      %v1983 = vpack.c.bf16 %v1921, %v1920
      %1984 = vst [vmem:[%s345] sm:$0xff] %v1980
      %1985 = vst [vmem:[%s345 + $0x8] sm:$0xff] %v1981
      %1986 = vst [vmem:[%s345 + $0x10] sm:$0xff] %v1982
      %1987 = vst [vmem:[%s345 + $0x18] sm:$0xff] %v1983
      %s1988 = smul.u32 8, %s23
      %p1989 = scmp.lt.s32.totalorder %s22, 1
      %s1990 = scalar_select %p1989, %s22, 1
      %p1991 = scmp.lt.s32.totalorder %s1988, 15
      %s1992 = scalar_select %p1991, %s1988, 15
      %s1993 = smul.addr %s1990, 16
      %s1994 = sadd.s32 %s1992, %s1993
      %s1995 = smul.addr %s1994, 4
      %s1996 = scalar_lea.vmem %s4, %s1995
      %p1997 = scmp.lt.s32.totalorder %s22, 1
      %s1998 = scalar_select %p1997, %s22, 1
      %s1999 = smul.addr %s1998, 8
      %s2000 = scalar_lea.vmem %s5, %s1999
      %p2001 = scmp.lt.s32.totalorder %s22, 1
      %s2002 = scalar_select %p2001, %s22, 1
      %s2003 = smul.addr %s2002, 8
      %s2004 = scalar_lea.vmem %s6, %s2003
      // Predicated region
      $region41: #{init_ffc_bn_act_forward.2} parent=35 // pred_check
        %p2005 = pneg %p150
      $region42: #{init_ffc_bn_act_forward.2} parent=35 // pred_check_branch
        %2007 = sbr.rel (%p2005) target = $region44
      $region43: #{init_ffc_bn_act_forward.2} parent=35 // pred_region
        %s2008 = smul.u32 8, %s23
      $region44: #{init_ffc_bn_act_forward.2} parent=35 // pred_fallthru
        _
      // Predicated region
      $region45: #{init_ffc_bn_act_forward.2} parent=35 // pred_check
        %p2009 = pneg %p176
      $region46: #{init_ffc_bn_act_forward.2} parent=35 // pred_check_branch
        %2011 = sbr.rel (%p2009) target = $region48
      $region47: #{init_ffc_bn_act_forward.2} parent=35 // pred_region
        _
      $region48: #{init_ffc_bn_act_forward.2} parent=35 // pred_fallthru
        _
      // Predicated region
      $region49: #{init_ffc_bn_act_forward.2} parent=35 // pred_check
        %p2012 = pneg %p202
      $region50: #{init_ffc_bn_act_forward.2} parent=35 // pred_check_branch
        %2014 = sbr.rel (%p2012) target = $region52
      $region51: #{init_ffc_bn_act_forward.2} parent=35 // pred_region
        _
      $region52: #{init_ffc_bn_act_forward.2} parent=35 // pred_fallthru
        _
    $region36: #{init_ffc_bn_act_forward.2} parent=5 // pred_fallthru
      _
    %p2015 = scmp.le.s32.totalorder 2, %s13
    // Predicated region
    $region53: #{init_ffc_bn_act_forward.2} parent=5 // pred_check
      %p2016 = pneg %p2015
    $region54: #{init_ffc_bn_act_forward.2} parent=5 // pred_check_branch
      %2018 = sbr.rel (%p2016) target = $region56
    $region55: #{init_ffc_bn_act_forward.2} parent=5 // pred_region
      %s2019 = ssub.s32 %s13, 2
      // Predicated region
      $region57: #{init_ffc_bn_act_forward.2} parent=55 // pred_check
        %p2020 = pneg %p156
      $region58: #{init_ffc_bn_act_forward.2} parent=55 // pred_check_branch
        %2022 = sbr.rel (%p2020) target = $region60
      $region59: #{init_ffc_bn_act_forward.2} parent=55 // pred_region
        %s2023 = smul.u32 8, %s25
        %p2024 = scmp.lt.s32.totalorder %s24, 1
        %s2025 = scalar_select %p2024, %s24, 1
        %p2026 = scmp.lt.s32.totalorder %s2023, 15
        %s2027 = scalar_select %p2026, %s2023, 15
        %s2028 = smul.addr %s2025, 16
        %s2029 = sadd.s32 %s2027, %s2028
        %s2030 = smul.addr %s2029, 4
        %s2031 = scalar_lea.vmem %s4, %s2030
      $region60: #{init_ffc_bn_act_forward.2} parent=55 // pred_fallthru
        _
      // Predicated region
      $region61: #{init_ffc_bn_act_forward.2} parent=55 // pred_check
        %p2032 = pneg %p182
      $region62: #{init_ffc_bn_act_forward.2} parent=55 // pred_check_branch
        %2034 = sbr.rel (%p2032) target = $region64
      $region63: #{init_ffc_bn_act_forward.2} parent=55 // pred_region
        %p2035 = scmp.lt.s32.totalorder %s24, 1
        %s2036 = scalar_select %p2035, %s24, 1
        %s2037 = smul.addr %s2036, 8
        %s2038 = scalar_lea.vmem %s5, %s2037
      $region64: #{init_ffc_bn_act_forward.2} parent=55 // pred_fallthru
        _
      // Predicated region
      $region65: #{init_ffc_bn_act_forward.2} parent=55 // pred_check
        %p2039 = pneg %p208
      $region66: #{init_ffc_bn_act_forward.2} parent=55 // pred_check_branch
        %2041 = sbr.rel (%p2039) target = $region68
      $region67: #{init_ffc_bn_act_forward.2} parent=55 // pred_region
        %p2042 = scmp.lt.s32.totalorder %s24, 1
        %s2043 = scalar_select %p2042, %s24, 1
        %s2044 = smul.addr %s2043, 8
        %s2045 = scalar_lea.vmem %s6, %s2044
      $region68: #{init_ffc_bn_act_forward.2} parent=55 // pred_fallthru
        _
    $region56: #{init_ffc_bn_act_forward.2} parent=5 // pred_fallthru
      _
  $region6: #{init_ffc_bn_act_forward.2} parent=0 // loop_footer
    %s17 = sadd.s32 1, %s13
  $region7: #{init_ffc_bn_act_forward.2} parent=0 // loop_footer_branch
    %12 = sbr.rel target = $region3
  $region8: #{init_ffc_bn_act_forward.2} parent=0 // loop_exit
    _

</llo_original>
